<compile_context>
chip_gen: v7x
topology: tpu7x:2x2x1
jax: 0.10.0
libtpu: 0.0.40
codegen_flags: <defaults>
</compile_context>

<pallas_src>
import math
import functools

import jax
import jax.numpy as jnp
from jax.experimental import pallas as pl
from jax.experimental.pallas import tpu as pltpu


def _attn_kernel(x_ref, ln_w_ref, ln_b_ref, w_ref, b_ref,
                 ctx_ref, probs_ref,
                 q_scr, k_scr, v_scr,
                 *, num_heads, qk_channels, dqk, dv, tile_q, eps, mxu_dtype):
    qi = pl.program_id(1)

    # ---- once per batch row (q-tile 0): LayerNorm + fused QKV projection ----
    @pl.when(qi == 0)
    def _():
        x = x_ref[0]                                         # (S, Dq) f32
        S = x.shape[0]
        mean = jnp.mean(x, axis=-1, keepdims=True)
        cen = x - mean
        var = jnp.mean(cen * cen, axis=-1, keepdims=True)    # biased var == nn.LayerNorm
        xn = cen * jax.lax.rsqrt(var + eps)
        xn = xn * ln_w_ref[...] + ln_b_ref[...]              # (S, Dq)

        # Single fused (S,Dq)x(Dq,2QK+V) matmul -> full MXU columns.
        # 1/sqrt(dqk) is already folded into the q slice of w/b.
        qkv = jnp.dot(xn.astype(mxu_dtype), w_ref[...].astype(mxu_dtype),
                      preferred_element_type=jnp.float32) + b_ref[...]   # (S, 2QK+V)

        # Split heads once per batch into head-major scratch, reused by all q-tiles.
        q_scr[...] = qkv[:, :qk_channels]                                   # (S, QK)
        k_scr[...] = jnp.transpose(
            qkv[:, qk_channels:2 * qk_channels].reshape(S, num_heads, dqk), (1, 0, 2))
        v_scr[...] = jnp.transpose(
            qkv[:, 2 * qk_channels:].reshape(S, num_heads, dv), (1, 0, 2))

    # ---- per q-tile attention (full key range resident in VMEM scratch) ----
    row0 = pl.multiple_of(qi * tile_q, tile_q)
    qt = q_scr[pl.ds(row0, tile_q), :]                                   # (TQ, QK)
    q3 = jnp.transpose(qt.reshape(tile_q, num_heads, dqk), (1, 0, 2))    # (H, TQ, dqk)
    k = k_scr[...]                                                       # (H, S, dqk)
    v = v_scr[...]                                                       # (H, S, dv)

    s = jnp.einsum('hqc,hkc->hqk', q3.astype(mxu_dtype), k.astype(mxu_dtype),
                   preferred_element_type=jnp.float32)                   # (H, TQ, S)

    m = jnp.max(s, axis=-1, keepdims=True)
    e = jnp.exp(s - m)
    l = jnp.sum(e, axis=-1, keepdims=True)
    # Exact reciprocal: attention_prob is externally visible -> rows must sum to 1.
    p = e * pl.reciprocal(l, approx=False)                               # (H, TQ, S)

    ctx = jnp.einsum('hqk,hkc->hqc', p.astype(mxu_dtype), v.astype(mxu_dtype),
                     preferred_element_type=jnp.float32)                 # (H, TQ, dv)

    # Lane-dense stores: context emitted directly as (TQ, H*dv)
    # (== torch permute(0,2,1,3).contiguous().view); probs keeps key dim S on lanes.
    ctx_ref[0] = jnp.transpose(ctx, (1, 0, 2)).reshape(
        tile_q, num_heads * dv).astype(ctx_ref.dtype)
    probs_ref[0] = p.astype(probs_ref.dtype)


def perceiver_self_attention(hidden_states, params, *, num_heads,
                             tile_q=None, mxu_dtype=jnp.float32, eps=1e-5):
    """hidden_states: (B, S, q_dim) float32. params: projection / LN weights.

    Weights are torch nn.Linear weights pre-transposed to (in_dim, out_dim).
    """
    B, S, Dq = hidden_states.shape
    QK = params["wq"].shape[1]
    V = params["wv"].shape[1]
    dqk = QK // num_heads
    dv = V // num_heads
    scale = 1.0 / math.sqrt(dqk)

    if tile_q is None:
        tile_q = min(S, 128)
    if S % tile_q != 0 or not (tile_q % 8 == 0 or tile_q == S):
        raise ValueError(f"tile_q={tile_q} must divide S={S} and be 8-aligned")
    n_qt = S // tile_q
    fused_out = 2 * QK + V

    # Wrapper-side layout plumbing (tiny, one-off XLA ops): fold the softmax scale
    # into the q projection and fuse the three projections into one weight matrix.
    w_fused = jnp.concatenate(
        [params["wq"] * scale, params["wk"], params["wv"]], axis=1)        # (Dq, 2QK+V)
    b_fused = jnp.concatenate(
        [params["bq"] * scale, params["bk"], params["bv"]]).reshape(1, fused_out)
    ln_w = params["ln_w"].reshape(1, Dq)
    ln_b = params["ln_b"].reshape(1, Dq)

    kernel = functools.partial(
        _attn_kernel, num_heads=num_heads, qk_channels=QK, dqk=dqk, dv=dv,
        tile_q=tile_q, eps=eps, mxu_dtype=mxu_dtype)

    # Replicated (non-batched) operands: same block every grid step.
    def rep(shape):
        n = len(shape)
        return pl.BlockSpec(shape, lambda b, q, _n=n: (0,) * _n)

    flops = (2 * B * S * Dq * fused_out                       # fused qkv projection
             + 2 * B * num_heads * S * S * (dqk + dv))        # scores + context
    transcendentals = B * num_heads * S * S                   # exp
    bytes_accessed = 4 * (B * S * Dq                          # x
                          + Dq * fused_out + fused_out + 2 * Dq   # params
                          + B * S * num_heads * dv            # context
                          + B * num_heads * S * S)            # probs writeback

    ctx, probs = pl.pallas_call(
        kernel,
        out_shape=(
            jax.ShapeDtypeStruct((B, S, num_heads * dv), jnp.float32),
            jax.ShapeDtypeStruct((B, num_heads, S, S), jnp.float32),
        ),
        grid_spec=pltpu.PrefetchScalarGridSpec(
            num_scalar_prefetch=0,
            grid=(B, n_qt),
            in_specs=[
                pl.BlockSpec((1, S, Dq), lambda b, q: (b, 0, 0)),   # hidden_states
                rep((1, Dq)),                                       # ln_w
                rep((1, Dq)),                                       # ln_b
                rep((Dq, fused_out)),                               # fused W (q|k|v)
                rep((1, fused_out)),                                # fused bias
            ],
            out_specs=[
                pl.BlockSpec((1, tile_q, num_heads * dv), lambda b, q: (b, q, 0)),
                pl.BlockSpec((1, num_heads, tile_q, S), lambda b, q: (b, 0, q, 0)),
            ],
            scratch_shapes=[
                pltpu.VMEM((S, QK), jnp.float32),                   # Q (row-major)
                pltpu.VMEM((num_heads, S, dqk), jnp.float32),       # K (head-major)
                pltpu.VMEM((num_heads, S, dv), jnp.float32),        # V (head-major)
            ],
        ),
        compiler_params=pltpu.CompilerParams(
            dimension_semantics=("parallel", "arbitrary")),
        cost_estimate=pl.CostEstimate(flops=flops,
                                      transcendentals=transcendentals,
                                      bytes_accessed=bytes_accessed),
    )(hidden_states, ln_w, ln_b, w_fused, b_fused)

    return {"context": ctx, "attention_prob": probs}


def _reference(hidden_states, params, *, num_heads):
    """Pure-JAX reference mirroring the PyTorch forward (self-attention path)."""
    B, S, Dq = hidden_states.shape
    mean = jnp.mean(hidden_states, axis=-1, keepdims=True)
    var = jnp.mean((hidden_states - mean) ** 2, axis=-1, keepdims=True)
    x = (hidden_states - mean) / jnp.sqrt(var + 1e-5)
    x = x * params["ln_w"] + params["ln_b"]

    q = x @ params["wq"] + params["bq"]
    k = x @ params["wk"] + params["bk"]
    v = x @ params["wv"] + params["bv"]

    def split_heads(t, dh):
        return t.reshape(B, S, num_heads, dh).transpose(0, 2, 1, 3)

    dqk = q.shape[-1] // num_heads
    dv = v.shape[-1] // num_heads
    qh, kh, vh = split_heads(q, dqk), split_heads(k, dqk), split_heads(v, dv)

    scores = jnp.einsum("bhqd,bhkd->bhqk", qh, kh) / math.sqrt(dqk)
    probs = jax.nn.softmax(scores, axis=-1)
    ctx = jnp.einsum("bhqk,bhkd->bhqd", probs, vh)
    ctx = ctx.transpose(0, 2, 1, 3).reshape(B, S, num_heads * dv)
    return {"context": ctx, "attention_prob": probs}


if __name__ == "__main__":
    # Module hyperparameters (self-attention: is_cross_attention=False)
    B, S = 2, 16
    q_dim = 32
    num_heads = 4
    qk_channels = 32      # defaults to q_dim when None
    v_channels = 32       # defaults to qk_channels when None

    key = jax.random.PRNGKey(0)
    ks = jax.random.split(key, 8)

    hidden_states = jax.random.normal(ks[0], (B, S, q_dim), dtype=jnp.float32)

    params = {
        "ln_w": 1.0 + 0.1 * jax.random.normal(ks[1], (q_dim,), dtype=jnp.float32),
        "ln_b": 0.1 * jax.random.normal(ks[2], (q_dim,), dtype=jnp.float32),
        # weights stored as (in_dim, out_dim) == torch Linear weight transposed
        "wq": 0.05 * jax.random.normal(ks[3], (q_dim, qk_channels), dtype=jnp.float32),
        "bq": 0.01 * jax.random.normal(ks[4], (qk_channels,), dtype=jnp.float32),
        "wk": 0.05 * jax.random.normal(ks[5], (q_dim, qk_channels), dtype=jnp.float32),
        "bk": 0.01 * jax.random.normal(ks[6], (qk_channels,), dtype=jnp.float32),
        "wv": 0.05 * jax.random.normal(ks[7], (q_dim, v_channels), dtype=jnp.float32),
        "bv": jnp.zeros((v_channels,), dtype=jnp.float32),
    }

    # tile_q=8 -> 2 q-tiles per batch: exercises the scratch-reuse / q-tiling path.
    # At realistic Perceiver sizes on v6e/v7x, also pass mxu_dtype=jnp.bfloat16.
    out = perceiver_self_attention(hidden_states, params,
                                   num_heads=num_heads, tile_q=8)
    jax.block_until_ready(out)

    ref = _reference(hidden_states, params, num_heads=num_heads)
    assert jnp.allclose(out["context"], ref["context"], atol=1e-5, rtol=1e-4)
    assert jnp.allclose(out["attention_prob"], ref["attention_prob"],
                        atol=1e-5, rtol=1e-4)

    print("KERNEL_OK")
</pallas_src>

<mosaic_0001>
module attributes {stable_mosaic.version = 11 : i64} {
  func.func @_attn_kernel(%arg0: i32, %arg1: i32, %arg2: memref<1x16x32xf32, #tpu.memory_space<vmem>>, %arg3: memref<1x32xf32, #tpu.memory_space<vmem>>, %arg4: memref<1x32xf32, #tpu.memory_space<vmem>>, %arg5: memref<32x96xf32, #tpu.memory_space<vmem>>, %arg6: memref<1x96xf32, #tpu.memory_space<vmem>>, %arg7: memref<1x8x32xf32, #tpu.memory_space<vmem>>, %arg8: memref<1x4x8x16xf32, #tpu.memory_space<vmem>>, %arg9: memref<16x32xf32, #tpu.memory_space<vmem>>, %arg10: memref<4x16x8xf32, #tpu.memory_space<vmem>>, %arg11: memref<4x16x8xf32, #tpu.memory_space<vmem>>) attributes {dimension_semantics = [#tpu.dimension_semantics<parallel>, #tpu.dimension_semantics<arbitrary>], iteration_bounds = array<i64: 2, 2>, scalar_prefetch = 0 : i64, scratch_operands = 3 : i64, tpu.core_type = #tpu.core_type<tc>, window_params = [{transform_indices = @transform_0, window_bounds = array<i64: 1, 16, 32>}, {pipeline_mode = #tpu.pipeline_mode<synchronous>, transform_indices = @transform_1, window_bounds = array<i64: 1, 32>}, {pipeline_mode = #tpu.pipeline_mode<synchronous>, transform_indices = @transform_2, window_bounds = array<i64: 1, 32>}, {pipeline_mode = #tpu.pipeline_mode<synchronous>, transform_indices = @transform_3, window_bounds = array<i64: 32, 96>}, {pipeline_mode = #tpu.pipeline_mode<synchronous>, transform_indices = @transform_4, window_bounds = array<i64: 1, 96>}, {transform_indices = @transform_5, window_bounds = array<i64: 1, 8, 32>}, {transform_indices = @transform_6, window_bounds = array<i64: 1, 4, 8, 16>}]} {
    %c0_i32 = arith.constant 0 : i32
    %0 = arith.cmpi eq, %arg1, %c0_i32 : i32
    %1 = arith.extui %0 : i1 to i32
    %c0_i32_0 = arith.constant 0 : i32
    %2 = arith.cmpi ne, %1, %c0_i32_0 : i32
    scf.if %2 {
      %c0_17 = arith.constant 0 : index
      %c0_18 = arith.constant 0 : index
      %c0_19 = arith.constant 0 : index
      %31 = vector.load %arg2[%c0_17, %c0_18, %c0_19] : memref<1x16x32xf32, #tpu.memory_space<vmem>>, vector<1x16x32xf32>
      %32 = vector.shape_cast %31 : vector<1x16x32xf32> to vector<16x32xf32>
      %cst_20 = arith.constant dense<0.000000e+00> : vector<16xf32>
      %33 = vector.multi_reduction <add>, %32, %cst_20 [1] : vector<16x32xf32> to vector<16xf32>
      %34 = vector.shape_cast %33 : vector<16xf32> to vector<16x1xf32>
      %cst_21 = arith.constant 3.200000e+01 : f32
      %35 = vector.broadcast %cst_21 : f32 to vector<16x1xf32>
      %36 = arith.divf %34, %35 : vector<16x1xf32>
      %37 = vector.broadcast %36 : vector<16x1xf32> to vector<16x32xf32>
      %38 = arith.subf %32, %37 : vector<16x32xf32>
      %39 = arith.mulf %38, %38 : vector<16x32xf32>
      %cst_22 = arith.constant dense<0.000000e+00> : vector<16xf32>
      %40 = vector.multi_reduction <add>, %39, %cst_22 [1] : vector<16x32xf32> to vector<16xf32>
      %41 = vector.shape_cast %40 : vector<16xf32> to vector<16x1xf32>
      %cst_23 = arith.constant 3.200000e+01 : f32
      %42 = vector.broadcast %cst_23 : f32 to vector<16x1xf32>
      %43 = arith.divf %41, %42 : vector<16x1xf32>
      %cst_24 = arith.constant 9.99999974E-6 : f32
      %44 = vector.broadcast %cst_24 : f32 to vector<16x1xf32>
      %45 = arith.addf %43, %44 : vector<16x1xf32>
      %46 = math.rsqrt %45 : vector<16x1xf32>
      %47 = vector.broadcast %46 : vector<16x1xf32> to vector<16x32xf32>
      %48 = arith.mulf %38, %47 : vector<16x32xf32>
      %c0_25 = arith.constant 0 : index
      %c0_26 = arith.constant 0 : index
      %49 = vector.load %arg3[%c0_25, %c0_26] : memref<1x32xf32, #tpu.memory_space<vmem>>, vector<1x32xf32>
      %50 = vector.broadcast %49 : vector<1x32xf32> to vector<16x32xf32>
      %51 = arith.mulf %48, %50 : vector<16x32xf32>
      %c0_27 = arith.constant 0 : index
      %c0_28 = arith.constant 0 : index
      %52 = vector.load %arg4[%c0_27, %c0_28] : memref<1x32xf32, #tpu.memory_space<vmem>>, vector<1x32xf32>
      %53 = vector.broadcast %52 : vector<1x32xf32> to vector<16x32xf32>
      %54 = arith.addf %51, %53 : vector<16x32xf32>
      %c0_29 = arith.constant 0 : index
      %c0_30 = arith.constant 0 : index
      %55 = vector.load %arg5[%c0_29, %c0_30] : memref<32x96xf32, #tpu.memory_space<vmem>>, vector<32x96xf32>
      %cst_31 = arith.constant dense<0.000000e+00> : vector<16x96xf32>
      %56 = tpu.matmul %54, %55, %cst_31 {dimension_numbers = #tpu.dot_dimension_numbers<[1], [0], [0], [1], [0, 0, 1, 1], [], []>} : vector<16x32xf32>, vector<32x96xf32>, vector<16x96xf32> -> vector<16x96xf32>
      %c0_32 = arith.constant 0 : index
      %c0_33 = arith.constant 0 : index
      %57 = vector.load %arg6[%c0_32, %c0_33] : memref<1x96xf32, #tpu.memory_space<vmem>>, vector<1x96xf32>
      %58 = vector.broadcast %57 : vector<1x96xf32> to vector<16x96xf32>
      %59 = arith.addf %56, %58 : vector<16x96xf32>
      %60 = vector.extract_strided_slice %59 {offsets = [0, 0], sizes = [16, 32], strides = [1, 1]} : vector<16x96xf32> to vector<16x32xf32>
      %c0_34 = arith.constant 0 : index
      %c0_35 = arith.constant 0 : index
      %61 = vector.load %arg9[%c0_34, %c0_35] : memref<16x32xf32, #tpu.memory_space<vmem>>, vector<16x32xf32>
      tpu.vector_store %arg9[%c0_34, %c0_35], %60 {strides = array<i32>} : memref<16x32xf32, #tpu.memory_space<vmem>>, vector<16x32xf32>,
      %62 = vector.extract_strided_slice %59 {offsets = [0, 32], sizes = [16, 32], strides = [1, 1]} : vector<16x96xf32> to vector<16x32xf32>
      %63 = vector.shape_cast %62 : vector<16x32xf32> to vector<16x4x8xf32>
      %64 = tpu.transpose %63, [1, 0, 2] : vector<16x4x8xf32> -> vector<4x16x8xf32>
      %c0_36 = arith.constant 0 : index
      %c0_37 = arith.constant 0 : index
      %c0_38 = arith.constant 0 : index
      %65 = vector.load %arg10[%c0_36, %c0_37, %c0_38] : memref<4x16x8xf32, #tpu.memory_space<vmem>>, vector<4x16x8xf32>
      tpu.vector_store %arg10[%c0_36, %c0_37, %c0_38], %64 {strides = array<i32>} : memref<4x16x8xf32, #tpu.memory_space<vmem>>, vector<4x16x8xf32>,
      %66 = vector.extract_strided_slice %59 {offsets = [0, 64], sizes = [16, 32], strides = [1, 1]} : vector<16x96xf32> to vector<16x32xf32>
      %67 = vector.shape_cast %66 : vector<16x32xf32> to vector<16x4x8xf32>
      %68 = tpu.transpose %67, [1, 0, 2] : vector<16x4x8xf32> -> vector<4x16x8xf32>
      %c0_39 = arith.constant 0 : index
      %c0_40 = arith.constant 0 : index
      %c0_41 = arith.constant 0 : index
      %69 = vector.load %arg11[%c0_39, %c0_40, %c0_41] : memref<4x16x8xf32, #tpu.memory_space<vmem>>, vector<4x16x8xf32>
      tpu.vector_store %arg11[%c0_39, %c0_40, %c0_41], %68 {strides = array<i32>} : memref<4x16x8xf32, #tpu.memory_space<vmem>>, vector<4x16x8xf32>,
    } else {
    }
    %c8_i32 = arith.constant 8 : i32
    %3 = arith.muli %arg1, %c8_i32 : i32
    %4 = tpu.assume_multiple %3, 8 : i32
    %5 = arith.index_cast %4 : i32 to index
    %c0 = arith.constant 0 : index
    %6 = vector.load %arg9[%5, %c0] : memref<16x32xf32, #tpu.memory_space<vmem>>, vector<8x32xf32>
    %7 = vector.shape_cast %6 : vector<8x32xf32> to vector<8x4x8xf32>
    %8 = tpu.transpose %7, [1, 0, 2] : vector<8x4x8xf32> -> vector<4x8x8xf32>
    %c0_1 = arith.constant 0 : index
    %c0_2 = arith.constant 0 : index
    %c0_3 = arith.constant 0 : index
    %9 = vector.load %arg10[%c0_1, %c0_2, %c0_3] : memref<4x16x8xf32, #tpu.memory_space<vmem>>, vector<4x16x8xf32>
    %c0_4 = arith.constant 0 : index
    %c0_5 = arith.constant 0 : index
    %c0_6 = arith.constant 0 : index
    %10 = vector.load %arg11[%c0_4, %c0_5, %c0_6] : memref<4x16x8xf32, #tpu.memory_space<vmem>>, vector<4x16x8xf32>
    "tpu.trace_start"() <{level = 10 : i32, message = "hqc,hkc->hqk"}> : () -> ()
    %cst = arith.constant dense<0.000000e+00> : vector<4x8x16xf32>
    %11 = tpu.matmul %8, %9, %cst {dimension_numbers = #tpu.dot_dimension_numbers<[2], [2], [1], [1], [0, 0, 0, 1, 1, 1], [0], [0]>} : vector<4x8x8xf32>, vector<4x16x8xf32>, vector<4x8x16xf32> -> vector<4x8x16xf32>
    "tpu.trace_stop"() : () -> ()
    %cst_7 = arith.constant dense<0xFF800000> : vector<4x8xf32>
    %12 = vector.multi_reduction <maximumf>, %11, %cst_7 [2] : vector<4x8x16xf32> to vector<4x8xf32>
    %13 = vector.shape_cast %12 : vector<4x8xf32> to vector<4x8x1xf32>
    %14 = vector.broadcast %13 : vector<4x8x1xf32> to vector<4x8x16xf32>
    %15 = arith.subf %11, %14 : vector<4x8x16xf32>
    %16 = math.exp %15 : vector<4x8x16xf32>
    %cst_8 = arith.constant dense<0.000000e+00> : vector<4x8xf32>
    %17 = vector.multi_reduction <add>, %16, %cst_8 [2] : vector<4x8x16xf32> to vector<4x8xf32>
    %18 = vector.shape_cast %17 : vector<4x8xf32> to vector<4x8x1xf32>
    %19 = tpu.reciprocal %18 : vector<4x8x1xf32> -> vector<4x8x1xf32>
    %20 = vector.broadcast %19 : vector<4x8x1xf32> to vector<4x8x16xf32>
    %21 = arith.mulf %16, %20 : vector<4x8x16xf32>
    "tpu.trace_start"() <{level = 10 : i32, message = "hqk,hkc->hqc"}> : () -> ()
    %cst_9 = arith.constant dense<0.000000e+00> : vector<4x8x8xf32>
    %22 = tpu.matmul %21, %10, %cst_9 {dimension_numbers = #tpu.dot_dimension_numbers<[2], [1], [1], [2], [0, 0, 0, 1, 1, 2], [0], [0]>} : vector<4x8x16xf32>, vector<4x16x8xf32>, vector<4x8x8xf32> -> vector<4x8x8xf32>
    "tpu.trace_stop"() : () -> ()
    %23 = tpu.transpose %22, [1, 0, 2] : vector<4x8x8xf32> -> vector<8x4x8xf32>
    %24 = vector.shape_cast %23 : vector<8x4x8xf32> to vector<8x32xf32>
    %c0_10 = arith.constant 0 : index
    %c0_11 = arith.constant 0 : index
    %c0_12 = arith.constant 0 : index
    %25 = vector.load %arg7[%c0_10, %c0_11, %c0_12] : memref<1x8x32xf32, #tpu.memory_space<vmem>>, vector<1x8x32xf32>
    %26 = vector.shape_cast %25 : vector<1x8x32xf32> to vector<8x32xf32>
    %27 = vector.shape_cast %24 : vector<8x32xf32> to vector<1x8x32xf32>
    tpu.vector_store %arg7[%c0_10, %c0_11, %c0_12], %27 {strides = array<i32>} : memref<1x8x32xf32, #tpu.memory_space<vmem>>, vector<1x8x32xf32>,
    %c0_13 = arith.constant 0 : index
    %c0_14 = arith.constant 0 : index
    %c0_15 = arith.constant 0 : index
    %c0_16 = arith.constant 0 : index
    %28 = vector.load %arg8[%c0_13, %c0_14, %c0_15, %c0_16] : memref<1x4x8x16xf32, #tpu.memory_space<vmem>>, vector<1x4x8x16xf32>
    %29 = vector.shape_cast %28 : vector<1x4x8x16xf32> to vector<4x8x16xf32>
    %30 = vector.shape_cast %21 : vector<4x8x16xf32> to vector<1x4x8x16xf32>
    tpu.vector_store %arg8[%c0_13, %c0_14, %c0_15, %c0_16], %30 {strides = array<i32>} : memref<1x4x8x16xf32, #tpu.memory_space<vmem>>, vector<1x4x8x16xf32>,
    return
  }
  func.func @transform_0(%arg0: i32, %arg1: i32) -> (i32, i32, i32) {
    %c0_i32 = arith.constant 0 : i32
    %c0_i32_0 = arith.constant 0 : i32
    %c0_i32_1 = arith.constant 0 : i32
    return %arg0, %c0_i32, %c0_i32_0 : i32, i32, i32
  }
  func.func @transform_1(%arg0: i32, %arg1: i32) -> (i32, i32) {
    %c0_i32 = arith.constant 0 : i32
    %c0_i32_0 = arith.constant 0 : i32
    %c0_i32_1 = arith.constant 0 : i32
    return %c0_i32, %c0_i32_0 : i32, i32
  }
  func.func @transform_2(%arg0: i32, %arg1: i32) -> (i32, i32) {
    %c0_i32 = arith.constant 0 : i32
    %c0_i32_0 = arith.constant 0 : i32
    %c0_i32_1 = arith.constant 0 : i32
    return %c0_i32, %c0_i32_0 : i32, i32
  }
  func.func @transform_3(%arg0: i32, %arg1: i32) -> (i32, i32) {
    %c0_i32 = arith.constant 0 : i32
    %c0_i32_0 = arith.constant 0 : i32
    %c0_i32_1 = arith.constant 0 : i32
    return %c0_i32, %c0_i32_0 : i32, i32
  }
  func.func @transform_4(%arg0: i32, %arg1: i32) -> (i32, i32) {
    %c0_i32 = arith.constant 0 : i32
    %c0_i32_0 = arith.constant 0 : i32
    %c0_i32_1 = arith.constant 0 : i32
    return %c0_i32, %c0_i32_0 : i32, i32
  }
  func.func @transform_5(%arg0: i32, %arg1: i32) -> (i32, i32, i32) {
    %c0_i32 = arith.constant 0 : i32
    %c0_i32_0 = arith.constant 0 : i32
    return %arg0, %arg1, %c0_i32 : i32, i32, i32
  }
  func.func @transform_6(%arg0: i32, %arg1: i32) -> (i32, i32, i32, i32) {
    %c0_i32 = arith.constant 0 : i32
    %c0_i32_0 = arith.constant 0 : i32
    %c0_i32_1 = arith.constant 0 : i32
    return %arg0, %c0_i32, %arg1, %c0_i32_0 : i32, i32, i32, i32
  }
}

</mosaic_0001>

<llo_original>
// kernel: tpu_custom_call.1
$region0: #{tpu_custom_call.1}
  #allocation0 [shape = 'u32[]', space=smem, size = 0x4, offset = 0x4, fixed_abs, tag = 'smem constant byte address 0x4 - core index']
  #allocation1 [shape = 'u32[144,128]{1,0:T(1,128)}', space=vmem, size = 0x12000, scoped, tag = 'internal scratch']
  #allocation2 [shape = 'f32[16,32]{1,0:T(8,128)}', space=vmem, size = 0x2000, scoped, tag = 'scratch operand']
  #allocation3 [shape = 'f32[4,16,8]{2,1,0:T(8,128)}', space=vmem, size = 0x8000, scoped, tag = 'scratch operand']
  #allocation4 [shape = 'f32[4,16,8]{2,1,0:T(8,128)}', space=vmem, size = 0x8000, scoped, tag = 'scratch operand']
  %s0 = inlined_call_operand.hbm [shape: f32[2,16,32], index: 0, kind: input, shape index: {}]
  %s1 = inlined_call_operand.vmem [shape: f32[1,32], index: 1, kind: input, shape index: {}]
  %s2 = inlined_call_operand.vmem [shape: f32[1,32], index: 2, kind: input, shape index: {}]
  %s3 = inlined_call_operand.hbm [shape: f32[32,96], index: 3, kind: input, shape index: {}]
  %s4 = inlined_call_operand.vmem [shape: f32[1,96], index: 4, kind: input, shape index: {}]
  %s5 = inlined_call_operand.hbm [shape: f32[2,16,32], index: 5, kind: output, shape index: {0}]
  %s6 = inlined_call_operand.hbm [shape: f32[2,4,16,16], index: 6, kind: output, shape index: {1}]
  %7 = xla_tuple %s5, %s6
  %s8 = sld [smem:[#allocation0]]
  $region73: #{tpu_custom_call.1} parent=0
    _
  %s10 = ssub.s32 1, %s8
  %s11 = scalar_select 0, %s10, %s8
  $region1: #{tpu_custom_call.1} parent=0
    #allocation5 [shape = 'u8[16384]{0}', space=vmem, size = 0x4000, scoped, tag = 'input window, operand 0']
    #allocation6 [shape = 's32[2]{0}', space=sflag, size = 0x8, scoped, tag = 'scoped memory for tpu_custom_call.1']
    #allocation7 [shape = 's32[2]{0}', space=sflag, size = 0x8, scoped, tag = 'scoped memory for tpu_custom_call.1']
    #allocation8 [shape = 'u8[16384]{0}', space=vmem, size = 0x4000, scoped, tag = 'input window, operand 3, single buffered']
    #allocation9 [shape = 's32[1]{0}', space=sflag, size = 0x4, scoped, tag = 'scoped memory for tpu_custom_call.1']
    #allocation10 [shape = 'u8[8192]{0}', space=vmem, size = 0x2000, scoped, tag = 'output window, operand 0']
    #allocation11 [shape = 'u8[32768]{0}', space=vmem, size = 0x8000, scoped, tag = 'output window, operand 1']
    #allocation12 [shape = 's32[2]{0}', space=sflag, size = 0x8, scoped, tag = 'scoped memory for tpu_custom_call.1']
    %12 = vsyncpa [#allocation6], 0
    %s13 = scalar_lea.sflag [#allocation6], 1
    %14 = vsyncpa %s13, 0
    %15 = vsyncpa [#allocation9], 0
    %16 = vsyncpa [#allocation7], 0
    %s17 = scalar_lea.sflag [#allocation7], 1
    %18 = vsyncpa %s17, 0
    %19 = vsyncpa [#allocation12], 0
    %s20 = scalar_lea.sflag [#allocation12], 1
    %21 = vsyncpa %s20, 0
    loop: start=0, step=1, limit=6
    $region2: #{tpu_custom_call.1} parent=1 // loop_pre_header
      _
    $region3: #{tpu_custom_call.1} parent=1 // loop_header
      %s23 = sphi 0, %s27
      %p24 = scmp.ge.s32.totalorder %s23, 6
      %s30 = sphi 0, %s42
      %s31 = sphi 0, %s38
      %s32 = sphi 0, %s30
      %s33 = sphi 0, %s31
      %s34 = sphi 0, %s32
      %s35 = sphi 0, %s33
      %s45 = sphi 0, %s47
      %s48 = sphi 0, %s45
      %s49 = sphi 0, %s48
      %s65 = sphi 0, %s49
      %s69 = sphi 0, %s69
      %s71 = sphi 0, %s69
      %s72 = sphi 0, %s71
      %s86 = sphi 0, %s72
      %s90 = sphi 0, %s90
      %s92 = sphi 0, %s90
      %s93 = sphi 0, %s92
      %s107 = sphi 0, %s93
      %s111 = sphi 0, %s111
      %s113 = sphi 0, %s111
      %s114 = sphi 0, %s113
      %s128 = sphi 0, %s114
      %s132 = sphi 0, %s132
      %s134 = sphi 0, %s132
      %s135 = sphi 0, %s134
      %s149 = sphi 0, %s135
      %s157 = sphi 0, %s159
      %s160 = sphi 0, %s157
      %s161 = sphi 0, %s160
      %s177 = sphi 0, %s161
      %s185 = sphi 0, %s187
      %s188 = sphi 0, %s185
      %s189 = sphi 0, %s188
      %s205 = sphi 0, %s189
    $region4: #{tpu_custom_call.1} parent=1 // loop_header_branch
      %26 = sbr.rel (%p24) target = $region8
    $region5: #{tpu_custom_call.1} parent=1 // loop_body
      %s28 = ssub.s32 %s23, 1
      %s29 = ssub.s32 %s23, 2
      %s36 = sadd.s32 1, %s31
      %p37 = scmp.ge.s32.totalorder %s36, 2
      %s38 = scalar_select %p37, 0, %s36
      %s39 = sadd.s32 1, %s30
      %s40 = scalar_select %p37, %s39, %s30
      %p41 = scmp.ge.s32.totalorder %s40, 2
      %s42 = scalar_select %p41, 0, %s40
      %s43 = ssub.s32 %s30, %s42
      %p44 = scmp.eq.s32.totalorder %s43, 0
      %s46 = sadd.s32 %s45, 1
      %s47 = scalar_select %p44, %s45, %s46
      %p50 = pneg %p44
      %p51 = scmp.eq.s32.totalorder %s23, 3
      %p52 = por %p50, %p51
      %p53 = scmp.ne.s32.totalorder %s45, %s48
      %p54 = scmp.eq.s32.totalorder %s23, 0
      %p55 = por %p53, %p54
      %p56 = scmp.ne.s32.totalorder %s45, %s48
      %p57 = scmp.eq.s32.totalorder %s28, 3
      %p58 = por %p56, %p57
      %p59 = scmp.ne.s32.totalorder %s48, %s49
      %p60 = scmp.eq.s32.totalorder %s28, 0
      %p61 = por %p59, %p60
      %p62 = scmp.ne.s32.totalorder %s48, %s49
      %p63 = scmp.eq.s32.totalorder %s29, 3
      %p64 = por %p62, %p63
      %p66 = scmp.ne.s32.totalorder %s49, %s65
      %p67 = scmp.eq.s32.totalorder %s29, 0
      %p68 = por %p66, %p67
      %s70 = sadd.s32 %s69, 1
      %p73 = scmp.eq.s32.totalorder %s23, 3
      %p74 = scmp.ne.s32.totalorder %s69, %s71
      %p75 = scmp.eq.s32.totalorder %s23, 0
      %p76 = por %p74, %p75
      %p77 = scmp.ne.s32.totalorder %s69, %s71
      %p78 = scmp.eq.s32.totalorder %s28, 3
      %p79 = por %p77, %p78
      %p80 = scmp.ne.s32.totalorder %s71, %s72
      %p81 = scmp.eq.s32.totalorder %s28, 0
      %p82 = por %p80, %p81
      %p83 = scmp.ne.s32.totalorder %s71, %s72
      %p84 = scmp.eq.s32.totalorder %s29, 3
      %p85 = por %p83, %p84
      %p87 = scmp.ne.s32.totalorder %s72, %s86
      %p88 = scmp.eq.s32.totalorder %s29, 0
      %p89 = por %p87, %p88
      %s91 = sadd.s32 %s90, 1
      %p94 = scmp.eq.s32.totalorder %s23, 3
      %p95 = scmp.ne.s32.totalorder %s90, %s92
      %p96 = scmp.eq.s32.totalorder %s23, 0
      %p97 = por %p95, %p96
      %p98 = scmp.ne.s32.totalorder %s90, %s92
      %p99 = scmp.eq.s32.totalorder %s28, 3
      %p100 = por %p98, %p99
      %p101 = scmp.ne.s32.totalorder %s92, %s93
      %p102 = scmp.eq.s32.totalorder %s28, 0
      %p103 = por %p101, %p102
      %p104 = scmp.ne.s32.totalorder %s92, %s93
      %p105 = scmp.eq.s32.totalorder %s29, 3
      %p106 = por %p104, %p105
      %p108 = scmp.ne.s32.totalorder %s93, %s107
      %p109 = scmp.eq.s32.totalorder %s29, 0
      %p110 = por %p108, %p109
      %s112 = sadd.s32 %s111, 1
      %p115 = scmp.eq.s32.totalorder %s23, 3
      %p116 = scmp.ne.s32.totalorder %s111, %s113
      %p117 = scmp.eq.s32.totalorder %s23, 0
      %p118 = por %p116, %p117
      %p119 = scmp.ne.s32.totalorder %s111, %s113
      %p120 = scmp.eq.s32.totalorder %s28, 3
      %p121 = por %p119, %p120
      %p122 = scmp.ne.s32.totalorder %s113, %s114
      %p123 = scmp.eq.s32.totalorder %s28, 0
      %p124 = por %p122, %p123
      %p125 = scmp.ne.s32.totalorder %s113, %s114
      %p126 = scmp.eq.s32.totalorder %s29, 3
      %p127 = por %p125, %p126
      %p129 = scmp.ne.s32.totalorder %s114, %s128
      %p130 = scmp.eq.s32.totalorder %s29, 0
      %p131 = por %p129, %p130
      %s133 = sadd.s32 %s132, 1
      %p136 = scmp.eq.s32.totalorder %s23, 3
      %p137 = scmp.ne.s32.totalorder %s132, %s134
      %p138 = scmp.eq.s32.totalorder %s23, 0
      %p139 = por %p137, %p138
      %p140 = scmp.ne.s32.totalorder %s132, %s134
      %p141 = scmp.eq.s32.totalorder %s28, 3
      %p142 = por %p140, %p141
      %p143 = scmp.ne.s32.totalorder %s134, %s135
      %p144 = scmp.eq.s32.totalorder %s28, 0
      %p145 = por %p143, %p144
      %p146 = scmp.ne.s32.totalorder %s134, %s135
      %p147 = scmp.eq.s32.totalorder %s29, 3
      %p148 = por %p146, %p147
      %p150 = scmp.ne.s32.totalorder %s135, %s149
      %p151 = scmp.eq.s32.totalorder %s29, 0
      %p152 = por %p150, %p151
      %s153 = ssub.s32 %s30, %s42
      %s154 = ssub.s32 %s31, %s38
      %s155 = sor.u32 %s153, %s154
      %p156 = scmp.eq.s32.totalorder %s155, 0
      %s158 = sadd.s32 %s157, 1
      %s159 = scalar_select %p156, %s157, %s158
      %p162 = pneg %p156
      %p163 = scmp.eq.s32.totalorder %s23, 3
      %p164 = por %p162, %p163
      %p165 = scmp.ne.s32.totalorder %s157, %s160
      %p166 = scmp.eq.s32.totalorder %s23, 0
      %p167 = por %p165, %p166
      %p168 = scmp.ne.s32.totalorder %s157, %s160
      %p169 = scmp.eq.s32.totalorder %s28, 3
      %p170 = por %p168, %p169
      %p171 = scmp.ne.s32.totalorder %s160, %s161
      %p172 = scmp.eq.s32.totalorder %s28, 0
      %p173 = por %p171, %p172
      %p174 = scmp.ne.s32.totalorder %s160, %s161
      %p175 = scmp.eq.s32.totalorder %s29, 3
      %p176 = por %p174, %p175
      %p178 = scmp.ne.s32.totalorder %s161, %s177
      %p179 = scmp.eq.s32.totalorder %s29, 0
      %p180 = por %p178, %p179
      %s181 = ssub.s32 %s30, %s42
      %s182 = ssub.s32 %s31, %s38
      %s183 = sor.u32 %s181, %s182
      %p184 = scmp.eq.s32.totalorder %s183, 0
      %s186 = sadd.s32 %s185, 1
      %s187 = scalar_select %p184, %s185, %s186
      %p190 = pneg %p184
      %p191 = scmp.eq.s32.totalorder %s23, 3
      %p192 = por %p190, %p191
      %p193 = scmp.ne.s32.totalorder %s185, %s188
      %p194 = scmp.eq.s32.totalorder %s23, 0
      %p195 = por %p193, %p194
      %p196 = scmp.ne.s32.totalorder %s185, %s188
      %p197 = scmp.eq.s32.totalorder %s28, 3
      %p198 = por %p196, %p197
      %p199 = scmp.ne.s32.totalorder %s188, %s189
      %p200 = scmp.eq.s32.totalorder %s28, 0
      %p201 = por %p199, %p200
      %p202 = scmp.ne.s32.totalorder %s188, %s189
      %p203 = scmp.eq.s32.totalorder %s29, 3
      %p204 = por %p202, %p203
      %p206 = scmp.ne.s32.totalorder %s189, %s205
      %p207 = scmp.eq.s32.totalorder %s29, 0
      %p208 = por %p206, %p207
      %p209 = scmp.le.s32.totalorder 1, %s23
      %p210 = scmp.lt.s32.totalorder %s23, 5
      %p211 = pnand %p209, %p210
      %p212 = pneg %p211
      // Predicated region
      $region9: #{tpu_custom_call.1} parent=5 // pred_check
        _
      $region10: #{tpu_custom_call.1} parent=5 // pred_check_branch
        %214 = sbr.rel (%p211) target = $region12
      $region11: #{tpu_custom_call.1} parent=5 // pred_region
        %s215 = ssub.s32 %s23, 1
        // Predicated region
        $region13: #{tpu_custom_call.1} parent=11 // pred_check
          %p216 = pneg %p82
        $region14: #{tpu_custom_call.1} parent=11 // pred_check_branch
          %218 = sbr.rel (%p216) target = $region16
        $region15: #{tpu_custom_call.1} parent=11 // pred_region
          _
        $region16: #{tpu_custom_call.1} parent=11 // pred_fallthru
          _
        // Predicated region
        $region17: #{tpu_custom_call.1} parent=11 // pred_check
          %p219 = pneg %p103
        $region18: #{tpu_custom_call.1} parent=11 // pred_check_branch
          %221 = sbr.rel (%p219) target = $region20
        $region19: #{tpu_custom_call.1} parent=11 // pred_region
          _
        $region20: #{tpu_custom_call.1} parent=11 // pred_fallthru
          _
        // Predicated region
        $region21: #{tpu_custom_call.1} parent=11 // pred_check
          %p222 = pneg %p124
        $region22: #{tpu_custom_call.1} parent=11 // pred_check_branch
          %224 = sbr.rel (%p222) target = $region24
        $region23: #{tpu_custom_call.1} parent=11 // pred_region
          %s226 = ssub.s32 512, 512
          %227 = vsyncadd [#allocation9], %s226
          %s228 = sshll.u32 [#allocation8], 4
          %s229 = int_to_ptr.vmem [resolvable:$true] %s228
          %234 = dma.hbm_to_vmem [thread:$0]  %s3, 512, %s229, [#allocation9], 128, 128, 8
        $region24: #{tpu_custom_call.1} parent=11 // pred_fallthru
          _
        // Predicated region
        $region25: #{tpu_custom_call.1} parent=11 // pred_check
          %p235 = pneg %p145
        $region26: #{tpu_custom_call.1} parent=11 // pred_check_branch
          %237 = sbr.rel (%p235) target = $region28
        $region27: #{tpu_custom_call.1} parent=11 // pred_region
          _
        $region28: #{tpu_custom_call.1} parent=11 // pred_fallthru
          _
      $region12: #{tpu_custom_call.1} parent=5 // pred_fallthru
        _
      %p238 = scmp.lt.s32.totalorder %s23, 4
      // Predicated region
      $region29: #{tpu_custom_call.1} parent=5 // pred_check
        %p239 = pneg %p238
      $region30: #{tpu_custom_call.1} parent=5 // pred_check_branch
        %241 = sbr.rel (%p239) target = $region32
      $region31: #{tpu_custom_call.1} parent=5 // pred_region
        // Predicated region
        $region33: #{tpu_custom_call.1} parent=31 // pred_check
          %p242 = pneg %p55
        $region34: #{tpu_custom_call.1} parent=31 // pred_check_branch
          %244 = sbr.rel (%p242) target = $region36
        $region35: #{tpu_custom_call.1} parent=31 // pred_region
          %s245 = sand.u32 %s45, 1
          %s246 = scalar_lea.sflag [#allocation6], %s245
          %s247 = sand.u32 %s45, 1
          %s248 = smul.addr %s247, 16
          %s249 = scalar_lea.vmem [#allocation5], %s248
          %s251 = ssub.s32 256, 256
          %252 = vsyncadd %s246, %s251
          %s253 = smul.addr %s30, 2
          %s254 = smul.addr %s253, 128
          %s255 = scalar_lea.hbm %s0, %s254
          %s256 = sshll.u32 %s249, 4
          %s257 = int_to_ptr.vmem [resolvable:$true] %s256
          %262 = dma.hbm_to_vmem [thread:$0]  %s255, 256, %s257, %s246, 128, 128, 8
        $region36: #{tpu_custom_call.1} parent=31 // pred_fallthru
          _
      $region32: #{tpu_custom_call.1} parent=5 // pred_fallthru
        _
      %p263 = scmp.le.s32.totalorder 1, %s23
      %p264 = scmp.lt.s32.totalorder %s23, 5
      %p265 = pnand %p263, %p264
      %p266 = pneg %p265
      // Predicated region
      $region37: #{tpu_custom_call.1} parent=5 // pred_check
        _
      $region38: #{tpu_custom_call.1} parent=5 // pred_check_branch
        %268 = sbr.rel (%p265) target = $region40
      $region39: #{tpu_custom_call.1} parent=5 // pred_region
        %s269 = ssub.s32 %s23, 1
        %s270 = sand.u32 %s48, 1
        %s271 = scalar_lea.sflag [#allocation6], %s270
        %s272 = sand.u32 %s48, 1
        %s273 = smul.addr %s272, 16
        %s274 = scalar_lea.vmem [#allocation5], %s273
        // Predicated region
        $region41: #{tpu_custom_call.1} parent=39 // pred_check
          %p275 = pneg %p61
        $region42: #{tpu_custom_call.1} parent=39 // pred_check_branch
          %277 = sbr.rel (%p275) target = $region44
        $region43: #{tpu_custom_call.1} parent=39 // pred_region
          %278 = dma.done %s271, 256
        $region44: #{tpu_custom_call.1} parent=39 // pred_fallthru
          _
        // Predicated region
        $region45: #{tpu_custom_call.1} parent=39 // pred_check
          %p279 = pneg %p124
        $region46: #{tpu_custom_call.1} parent=39 // pred_check_branch
          %281 = sbr.rel (%p279) target = $region48
        $region47: #{tpu_custom_call.1} parent=39 // pred_region
          %282 = dma.done [#allocation9], 512
        $region48: #{tpu_custom_call.1} parent=39 // pred_fallthru
          _
        %s283 = sand.u32 %s48, 1
        %s284 = scalar_lea.sflag [#allocation6], %s283
        %s285 = sand.u32 %s48, 1
        %s286 = smul.addr %s285, 16
        %s287 = scalar_lea.vmem [#allocation5], %s286
        %p288 = pneg %p61
        %p289 = pneg %p58
        %p290 = pneg %p82
        %p291 = pneg %p79
        %p292 = pneg %p103
        %p293 = pneg %p100
        %p294 = pneg %p124
        %p295 = pneg %p121
        %p296 = pneg %p145
        %p297 = pneg %p142
        %p298 = pneg %p173
        %p299 = pneg %p170
        %s300 = sand.u32 %s160, 1
        %s301 = scalar_lea.sflag [#allocation7], %s300
        %s302 = sand.u32 %s160, 1
        %s303 = smul.addr %s302, 8
        %s304 = scalar_lea.vmem [#allocation10], %s303
        %p305 = pneg %p201
        %p306 = pneg %p198
        %s307 = sand.u32 %s188, 1
        %s308 = scalar_lea.sflag [#allocation12], %s307
        %s309 = sand.u32 %s188, 1
        %s310 = smul.addr %s309, 32
        %s311 = scalar_lea.vmem [#allocation11], %s310
        %p312 = scmp.eq.s32.totalorder %s33, 0
        // Predicated region
        $region49: #{tpu_custom_call.1} parent=39 // pred_check
          %p313 = pneg %p312
        $region50: #{tpu_custom_call.1} parent=39 // pred_check_branch
          %315 = sbr.rel (%p313) target = $region52
        $region51: #{tpu_custom_call.1} parent=39 // pred_region
          %v316 = vld [vmem:[%s274] sm:$0xff]
          %v317 = vld [vmem:[%s274 + $0x8] sm:$0xff]
          %vm318 = vcmask 261120
          %v319 = vsel %vm318, %v316, 0.0
          %320 = vadd.xlane.f32.xlu0 %v319
          %v321 = vpop.xlane.xlu0 %320
          %v322 = vsel %vm318, %v317, 0.0
          %323 = vadd.xlane.f32.xlu0 %v322
          %v324 = vpop.xlane.xlu0 %323
          %v325 = vrcp.pop 32.0
          %v326 = vmul.f32 %v321, %v325
          %v327 = vmul.f32 %v324, %v325
          %v328 = vsub.f32 %v316, %v326
          %v329 = vsub.f32 %v317, %v327
          %v330 = vmul.f32 %v328, %v328
          %v331 = vmul.f32 %v329, %v329
          %v332 = vsel %vm318, %v330, 0.0
          %333 = vadd.xlane.f32.xlu0 %v332
          %v334 = vpop.xlane.xlu0 %333
          %v335 = vsel %vm318, %v331, 0.0
          %336 = vadd.xlane.f32.xlu0 %v335
          %v337 = vpop.xlane.xlu0 %336
          %v338 = vmul.f32 %v334, %v325
          %v339 = vmul.f32 %v337, %v325
          %v340 = vadd.f32 %v338, 1e-05
          %v341 = vadd.f32 %v339, 1e-05
          %v342 = vrsqrt.pop %v340
          %v343 = vrsqrt.pop %v341
          %v344 = vmul.f32 %v328, %v342
          %v345 = vmul.f32 %v329, %v343
          %v346 = vld [vmem:[%s1] sm:$0x1]
          %v348 = vlaneseq
          %v349 = vshrl.u32 %v348, 7
          %v350 = vsub.s32 0, %v349
          %v351 = vrot.slane %v346, %v350
          %v353 = vmul.f32 %v344, %v351
          %v354 = vmul.f32 %v345, %v351
          %v355 = vld [vmem:[%s2] sm:$0x1]
          %v357 = vlaneseq
          %v358 = vshrl.u32 %v357, 7
          %v359 = vsub.s32 0, %v358
          %v360 = vrot.slane %v355, %v359
          %v362 = vadd.f32 %v353, %v360
          %v363 = vadd.f32 %v354, %v360
          %v364 = vld [vmem:[#allocation8] sm:$0xff]
          %v365 = vld [vmem:[#allocation8 + $0x8] sm:$0xff]
          %v366 = vld [vmem:[#allocation8 + $0x10] sm:$0xff]
          %v367 = vld [vmem:[#allocation8 + $0x18] sm:$0xff]
          %v368 = vld [vmem:[%s4] sm:$0x1]
          %v370 = vlaneseq
          %v371 = vshrl.u32 %v370, 7
          %v372 = vsub.s32 0, %v371
          %v373 = vrot.slane %v368, %v372
          %v376 = vsel %vm318, %v362, 0
          %v379 = vsel %vm318, %v363, 0
          %381 = vmatprep.subr.mxu0 0.0
          %382 = vmatpush1.msra.mxu0 %v364
          %383 = vmatprep.subr.mxu0 0.0
          %384 = vmatpush1.msra.mxu0 %v365
          %385 = vmatprep.subr.mxu0 0.0
          %386 = vmatpush1.msra.mxu0 %v366
          %387 = vmatprep.subr.mxu0 0.0
          %388 = vmatpush1.msra.mxu0 %v367
          %389 = vmatprep.subr.mxu0 0.0
          %390 = vmatpush1.msra.mxu0 0.0
          %391 = vmatprep.subr.mxu0 0.0
          %392 = vmatpush1.msra.mxu0 0.0
          %393 = vmatprep.subr.mxu0 0.0
          %394 = vmatpush1.msra.mxu0 0.0
          %395 = vmatprep.subr.mxu0 0.0
          %396 = vmatpush1.msra.mxu0 0.0
          %397 = vmatprep.subr.mxu0 0.0
          %398 = vmatpush1.msra.mxu0 0.0
          %399 = vmatprep.subr.mxu0 0.0
          %400 = vmatpush1.msra.mxu0 0.0
          %401 = vmatprep.subr.mxu0 0.0
          %402 = vmatpush1.msra.mxu0 0.0
          %403 = vmatprep.subr.mxu0 0.0
          %404 = vmatpush1.msra.mxu0 0.0
          %405 = vmatprep.subr.mxu0 0.0
          %406 = vmatpush1.msra.mxu0 0.0
          %407 = vmatprep.subr.mxu0 0.0
          %408 = vmatpush1.msra.mxu0 0.0
          %409 = vmatprep.subr.mxu0 0.0
          %410 = vmatpush1.msra.mxu0 0.0
          %411 = vmatprep.subr.mxu0 0.0
          %412 = vmatpush1.msra.mxu0 0.0
          %413 = vmatprep.subr.mxu0 0.0
          %414 = vmatpush1.msra.mxu0 0.0
          %415 = vmatprep.subr.mxu0 0.0
          %416 = vmatpush1.msra.mxu0 0.0
          %417 = vmatprep.subr.mxu0 0.0
          %418 = vmatpush1.msra.mxu0 0.0
          %419 = vmatprep.subr.mxu0 0.0
          %420 = vmatpush1.msra.mxu0 0.0
          %421 = vmatprep.subr.mxu0 0.0
          %422 = vmatpush1.msra.mxu0 0.0
          %423 = vmatprep.subr.mxu0 0.0
          %424 = vmatpush1.msra.mxu0 0.0
          %425 = vmatprep.subr.mxu0 0.0
          %426 = vmatpush1.msra.mxu0 0.0
          %427 = vmatprep.subr.mxu0 0.0
          %428 = vmatpush1.msra.mxu0 0.0
          %429 = vmatprep.subr.mxu0 0.0
          %430 = vmatpush1.msra.mxu0 0.0
          %431 = vmatprep.subr.mxu0 0.0
          %432 = vmatpush1.msra.mxu0 0.0
          %433 = vmatprep.subr.mxu0 0.0
          %434 = vmatpush1.msra.mxu0 0.0
          %435 = vmatprep.subr.mxu0 0.0
          %436 = vmatpush1.msra.mxu0 0.0
          %437 = vmatprep.subr.mxu0 0.0
          %438 = vmatpush1.msra.mxu0 0.0
          %439 = vmatprep.subr.mxu0 0.0
          %440 = vmatpush1.msra.mxu0 0.0
          %441 = vmatprep.subr.mxu0 0.0
          %442 = vmatpush1.msra.mxu0 0.0
          %443 = vmatprep.subr.mxu0 0.0
          %444 = vmatpush1.msra.mxu0 0.0
          %445 = vmatprep.mubr.f32.mxu0 0.0
          %446 = vmatmul.mubr.f32.gmra.mrb[0].mxu0 %v376
          %v447 = vpop.f32.mrb[0].mxu0
          %v448 = vadd.f32 %v373, %v447
          %v449 = vpop.f32.mrb[0].mxu0
          %450 = vmatprep.mubr.f32.mxu0 0.0
          %451 = vmatmul.mubr.f32.gmra.mrb[0].mxu0 %v379
          %v452 = vpop.f32.mrb[0].mxu0
          %v453 = vadd.f32 %v373, %v452
          %v454 = vpop.f32.mrb[0].mxu0
          %455 = vdwg.mxu0
          %456 = vst.msk [vmem:[#allocation2] sm:$0xff] %vm318, %v448
          %457 = vst.msk [vmem:[#allocation2 + $0x8] sm:$0xff] %vm318, %v453
          %460 = vrot.lane.b32.xlu0 %v448, 120
          %v461 = vpop.permute.xlu0 %460
          %462 = vrot.lane.b32.xlu0 %v453, 120
          %v463 = vpop.permute.xlu0 %462
          %464 = vrot.lane.b32.xlu0 %v448, 112
          %v465 = vpop.permute.xlu0 %464
          %466 = vrot.lane.b32.xlu0 %v453, 112
          %v467 = vpop.permute.xlu0 %466
          %468 = vrot.lane.b32.xlu0 %v448, 104
          %v469 = vpop.permute.xlu0 %468
          %470 = vrot.lane.b32.xlu0 %v453, 104
          %v471 = vpop.permute.xlu0 %470
          %472 = vrot.lane.b32.xlu0 %v448, 96
          %v473 = vpop.permute.xlu0 %472
          %474 = vrot.lane.b32.xlu0 %v453, 96
          %v475 = vpop.permute.xlu0 %474
          %476 = vrot.lane.b32.xlu0 %v461, 96
          %v477 = vpop.permute.xlu0 %476
          %478 = vrot.lane.b32.xlu0 %v463, 96
          %v479 = vpop.permute.xlu0 %478
          %480 = vrot.lane.b32.xlu0 %v465, 96
          %v481 = vpop.permute.xlu0 %480
          %482 = vrot.lane.b32.xlu0 %v467, 96
          %v483 = vpop.permute.xlu0 %482
          %484 = vrot.lane.b32.xlu0 %v469, 96
          %v485 = vpop.permute.xlu0 %484
          %486 = vrot.lane.b32.xlu0 %v471, 96
          %v487 = vpop.permute.xlu0 %486
          %v496 = vcombine.low %v473, %v481
          %v497 = vcombine.high %v473, %v481
          %v499 = vunpack.c.l.s4 1983009808
          %v500 = vunpack.c.0.s8 %v499
          %v501 = vlaneseq
          %v502 = vshrl.u32 %v501, 7
          %v503 = vsub.s32 %v500, %v502
          %v504 = vrot.slane %v496, %v503
          %v506 = vunpack.c.l.s4 1983009808
          %v507 = vunpack.c.0.s8 %v506
          %v508 = vlaneseq
          %v509 = vshrl.u32 %v508, 7
          %v510 = vsub.s32 %v507, %v509
          %v511 = vrot.slane %v497, %v510
          %v512 = vcombine.low %v477, %v485
          %v513 = vcombine.high %v477, %v485
          %v515 = vunpack.c.l.s4 1983009808
          %v516 = vunpack.c.0.s8 %v515
          %v517 = vlaneseq
          %v518 = vshrl.u32 %v517, 7
          %v519 = vsub.s32 %v516, %v518
          %v520 = vrot.slane %v512, %v519
          %v522 = vunpack.c.l.s4 1983009808
          %v523 = vunpack.c.0.s8 %v522
          %v524 = vlaneseq
          %v525 = vshrl.u32 %v524, 7
          %v526 = vsub.s32 %v523, %v525
          %v527 = vrot.slane %v513, %v526
          %v528 = vcombine.low %v504, %v520
          %v529 = vcombine.high %v504, %v520
          %v531 = vunpack.c.l.s4 1934713408
          %v532 = vunpack.c.0.s8 %v531
          %v533 = vlaneseq
          %v534 = vshrl.u32 %v533, 7
          %v535 = vsub.s32 %v532, %v534
          %v536 = vrot.slane %v528, %v535
          %v538 = vunpack.c.l.s4 1934713408
          %v539 = vunpack.c.0.s8 %v538
          %v540 = vlaneseq
          %v541 = vshrl.u32 %v540, 7
          %v542 = vsub.s32 %v539, %v541
          %v543 = vrot.slane %v529, %v542
          %v544 = vcombine.low %v511, %v527
          %v545 = vcombine.high %v511, %v527
          %v547 = vunpack.c.l.s4 1934713408
          %v548 = vunpack.c.0.s8 %v547
          %v549 = vlaneseq
          %v550 = vshrl.u32 %v549, 7
          %v551 = vsub.s32 %v548, %v550
          %v552 = vrot.slane %v544, %v551
          %v554 = vunpack.c.l.s4 1934713408
          %v555 = vunpack.c.0.s8 %v554
          %v556 = vlaneseq
          %v557 = vshrl.u32 %v556, 7
          %v558 = vsub.s32 %v555, %v557
          %v559 = vrot.slane %v545, %v558
          %v560 = vcombine.high %v536, 0.0
          %v561 = vcombine.high %v543, 0.0
          %v562 = vcombine.high %v552, 0.0
          %v563 = vcombine.high %v559, 0.0
          %v564 = vcombine.low %v475, %v483
          %v565 = vcombine.high %v475, %v483
          %v567 = vunpack.c.l.s4 1983009808
          %v568 = vunpack.c.0.s8 %v567
          %v569 = vlaneseq
          %v570 = vshrl.u32 %v569, 7
          %v571 = vsub.s32 %v568, %v570
          %v572 = vrot.slane %v564, %v571
          %v574 = vunpack.c.l.s4 1983009808
          %v575 = vunpack.c.0.s8 %v574
          %v576 = vlaneseq
          %v577 = vshrl.u32 %v576, 7
          %v578 = vsub.s32 %v575, %v577
          %v579 = vrot.slane %v565, %v578
          %v580 = vcombine.low %v479, %v487
          %v581 = vcombine.high %v479, %v487
          %v583 = vunpack.c.l.s4 1983009808
          %v584 = vunpack.c.0.s8 %v583
          %v585 = vlaneseq
          %v586 = vshrl.u32 %v585, 7
          %v587 = vsub.s32 %v584, %v586
          %v588 = vrot.slane %v580, %v587
          %v590 = vunpack.c.l.s4 1983009808
          %v591 = vunpack.c.0.s8 %v590
          %v592 = vlaneseq
          %v593 = vshrl.u32 %v592, 7
          %v594 = vsub.s32 %v591, %v593
          %v595 = vrot.slane %v581, %v594
          %v596 = vcombine.low %v572, %v588
          %v597 = vcombine.high %v572, %v588
          %v599 = vunpack.c.l.s4 1934713408
          %v600 = vunpack.c.0.s8 %v599
          %v601 = vlaneseq
          %v602 = vshrl.u32 %v601, 7
          %v603 = vsub.s32 %v600, %v602
          %v604 = vrot.slane %v596, %v603
          %v606 = vunpack.c.l.s4 1934713408
          %v607 = vunpack.c.0.s8 %v606
          %v608 = vlaneseq
          %v609 = vshrl.u32 %v608, 7
          %v610 = vsub.s32 %v607, %v609
          %v611 = vrot.slane %v597, %v610
          %v612 = vcombine.low %v579, %v595
          %v613 = vcombine.high %v579, %v595
          %v615 = vunpack.c.l.s4 1934713408
          %v616 = vunpack.c.0.s8 %v615
          %v617 = vlaneseq
          %v618 = vshrl.u32 %v617, 7
          %v619 = vsub.s32 %v616, %v618
          %v620 = vrot.slane %v612, %v619
          %v622 = vunpack.c.l.s4 1934713408
          %v623 = vunpack.c.0.s8 %v622
          %v624 = vlaneseq
          %v625 = vshrl.u32 %v624, 7
          %v626 = vsub.s32 %v623, %v625
          %v627 = vrot.slane %v613, %v626
          %v628 = vcombine.high %v604, 0.0
          %v629 = vcombine.high %v611, 0.0
          %v630 = vcombine.high %v620, 0.0
          %v631 = vcombine.high %v627, 0.0
          %v632 = vcombine.low %v536, %v543
          %v634 = vunpack.c.l.s4 1983009808
          %v635 = vunpack.c.0.s8 %v634
          %v636 = vlaneseq
          %v637 = vshrl.u32 %v636, 7
          %v638 = vsub.s32 %v635, %v637
          %v639 = vrot.slane %v632, %v638
          %v640 = vcombine.low %v560, %v561
          %v642 = vunpack.c.l.s4 1983009808
          %v643 = vunpack.c.0.s8 %v642
          %v644 = vlaneseq
          %v645 = vshrl.u32 %v644, 7
          %v646 = vsub.s32 %v643, %v645
          %v647 = vrot.slane %v640, %v646
          %v648 = vcombine.low %v552, %v559
          %v650 = vunpack.c.l.s4 1983009808
          %v651 = vunpack.c.0.s8 %v650
          %v652 = vlaneseq
          %v653 = vshrl.u32 %v652, 7
          %v654 = vsub.s32 %v651, %v653
          %v655 = vrot.slane %v648, %v654
          %v656 = vcombine.low %v562, %v563
          %v658 = vunpack.c.l.s4 1983009808
          %v659 = vunpack.c.0.s8 %v658
          %v660 = vlaneseq
          %v661 = vshrl.u32 %v660, 7
          %v662 = vsub.s32 %v659, %v661
          %v663 = vrot.slane %v656, %v662
          %v664 = vcombine.low %v639, %v647
          %v665 = vcombine.high %v639, %v647
          %v667 = vunpack.c.l.s4 1934713408
          %v668 = vunpack.c.0.s8 %v667
          %v669 = vlaneseq
          %v670 = vshrl.u32 %v669, 7
          %v671 = vsub.s32 %v668, %v670
          %v672 = vrot.slane %v664, %v671
          %v674 = vunpack.c.l.s4 1934713408
          %v675 = vunpack.c.0.s8 %v674
          %v676 = vlaneseq
          %v677 = vshrl.u32 %v676, 7
          %v678 = vsub.s32 %v675, %v677
          %v679 = vrot.slane %v665, %v678
          %v680 = vcombine.low %v655, %v663
          %v681 = vcombine.high %v655, %v663
          %v683 = vunpack.c.l.s4 1934713408
          %v684 = vunpack.c.0.s8 %v683
          %v685 = vlaneseq
          %v686 = vshrl.u32 %v685, 7
          %v687 = vsub.s32 %v684, %v686
          %v688 = vrot.slane %v680, %v687
          %v690 = vunpack.c.l.s4 1934713408
          %v691 = vunpack.c.0.s8 %v690
          %v692 = vlaneseq
          %v693 = vshrl.u32 %v692, 7
          %v694 = vsub.s32 %v691, %v693
          %v695 = vrot.slane %v681, %v694
          %v696 = vcombine.low %v672, %v688
          %v697 = vcombine.high %v672, %v688
          %v698 = vcombine.low %v679, %v695
          %v699 = vcombine.high %v679, %v695
          %v700 = vcombine.low %v604, %v611
          %v702 = vunpack.c.l.s4 1983009808
          %v703 = vunpack.c.0.s8 %v702
          %v704 = vlaneseq
          %v705 = vshrl.u32 %v704, 7
          %v706 = vsub.s32 %v703, %v705
          %v707 = vrot.slane %v700, %v706
          %v708 = vcombine.low %v628, %v629
          %v710 = vunpack.c.l.s4 1983009808
          %v711 = vunpack.c.0.s8 %v710
          %v712 = vlaneseq
          %v713 = vshrl.u32 %v712, 7
          %v714 = vsub.s32 %v711, %v713
          %v715 = vrot.slane %v708, %v714
          %v716 = vcombine.low %v620, %v627
          %v718 = vunpack.c.l.s4 1983009808
          %v719 = vunpack.c.0.s8 %v718
          %v720 = vlaneseq
          %v721 = vshrl.u32 %v720, 7
          %v722 = vsub.s32 %v719, %v721
          %v723 = vrot.slane %v716, %v722
          %v724 = vcombine.low %v630, %v631
          %v726 = vunpack.c.l.s4 1983009808
          %v727 = vunpack.c.0.s8 %v726
          %v728 = vlaneseq
          %v729 = vshrl.u32 %v728, 7
          %v730 = vsub.s32 %v727, %v729
          %v731 = vrot.slane %v724, %v730
          %v732 = vcombine.low %v707, %v715
          %v733 = vcombine.high %v707, %v715
          %v735 = vunpack.c.l.s4 1934713408
          %v736 = vunpack.c.0.s8 %v735
          %v737 = vlaneseq
          %v738 = vshrl.u32 %v737, 7
          %v739 = vsub.s32 %v736, %v738
          %v740 = vrot.slane %v732, %v739
          %v742 = vunpack.c.l.s4 1934713408
          %v743 = vunpack.c.0.s8 %v742
          %v744 = vlaneseq
          %v745 = vshrl.u32 %v744, 7
          %v746 = vsub.s32 %v743, %v745
          %v747 = vrot.slane %v733, %v746
          %v748 = vcombine.low %v723, %v731
          %v749 = vcombine.high %v723, %v731
          %v751 = vunpack.c.l.s4 1934713408
          %v752 = vunpack.c.0.s8 %v751
          %v753 = vlaneseq
          %v754 = vshrl.u32 %v753, 7
          %v755 = vsub.s32 %v752, %v754
          %v756 = vrot.slane %v748, %v755
          %v758 = vunpack.c.l.s4 1934713408
          %v759 = vunpack.c.0.s8 %v758
          %v760 = vlaneseq
          %v761 = vshrl.u32 %v760, 7
          %v762 = vsub.s32 %v759, %v761
          %v763 = vrot.slane %v749, %v762
          %v764 = vcombine.low %v740, %v756
          %v765 = vcombine.high %v740, %v756
          %v766 = vcombine.low %v747, %v763
          %v767 = vcombine.high %v747, %v763
          %vm768 = vcmask 64512
          %769 = vst.msk [vmem:[#allocation3] sm:$0xff] %vm768, %v696
          %770 = vst.msk [vmem:[#allocation3 + $0x8] sm:$0xff] %vm768, %v764
          %771 = vst.msk [vmem:[#allocation3 + $0x10] sm:$0xff] %vm768, %v697
          %772 = vst.msk [vmem:[#allocation3 + $0x18] sm:$0xff] %vm768, %v765
          %773 = vst.msk [vmem:[#allocation3 + $0x20] sm:$0xff] %vm768, %v698
          %774 = vst.msk [vmem:[#allocation3 + $0x28] sm:$0xff] %vm768, %v766
          %775 = vst.msk [vmem:[#allocation3 + $0x30] sm:$0xff] %vm768, %v699
          %776 = vst.msk [vmem:[#allocation3 + $0x38] sm:$0xff] %vm768, %v767
          %777 = vrot.lane.b32.xlu0 %v448, 64
          %v778 = vpop.permute.xlu0 %777
          %779 = vrot.lane.b32.xlu0 %v453, 64
          %v780 = vpop.permute.xlu0 %779
          %781 = vrot.lane.b32.xlu0 %v461, 64
          %v782 = vpop.permute.xlu0 %781
          %783 = vrot.lane.b32.xlu0 %v463, 64
          %v784 = vpop.permute.xlu0 %783
          %785 = vrot.lane.b32.xlu0 %v465, 64
          %v786 = vpop.permute.xlu0 %785
          %787 = vrot.lane.b32.xlu0 %v467, 64
          %v788 = vpop.permute.xlu0 %787
          %789 = vrot.lane.b32.xlu0 %v469, 64
          %v790 = vpop.permute.xlu0 %789
          %791 = vrot.lane.b32.xlu0 %v471, 64
          %v792 = vpop.permute.xlu0 %791
          %v801 = vcombine.low %v778, %v786
          %v802 = vcombine.high %v778, %v786
          %v804 = vunpack.c.l.s4 1983009808
          %v805 = vunpack.c.0.s8 %v804
          %v806 = vlaneseq
          %v807 = vshrl.u32 %v806, 7
          %v808 = vsub.s32 %v805, %v807
          %v809 = vrot.slane %v801, %v808
          %v811 = vunpack.c.l.s4 1983009808
          %v812 = vunpack.c.0.s8 %v811
          %v813 = vlaneseq
          %v814 = vshrl.u32 %v813, 7
          %v815 = vsub.s32 %v812, %v814
          %v816 = vrot.slane %v802, %v815
          %v817 = vcombine.low %v782, %v790
          %v818 = vcombine.high %v782, %v790
          %v820 = vunpack.c.l.s4 1983009808
          %v821 = vunpack.c.0.s8 %v820
          %v822 = vlaneseq
          %v823 = vshrl.u32 %v822, 7
          %v824 = vsub.s32 %v821, %v823
          %v825 = vrot.slane %v817, %v824
          %v827 = vunpack.c.l.s4 1983009808
          %v828 = vunpack.c.0.s8 %v827
          %v829 = vlaneseq
          %v830 = vshrl.u32 %v829, 7
          %v831 = vsub.s32 %v828, %v830
          %v832 = vrot.slane %v818, %v831
          %v833 = vcombine.low %v809, %v825
          %v834 = vcombine.high %v809, %v825
          %v836 = vunpack.c.l.s4 1934713408
          %v837 = vunpack.c.0.s8 %v836
          %v838 = vlaneseq
          %v839 = vshrl.u32 %v838, 7
          %v840 = vsub.s32 %v837, %v839
          %v841 = vrot.slane %v833, %v840
          %v843 = vunpack.c.l.s4 1934713408
          %v844 = vunpack.c.0.s8 %v843
          %v845 = vlaneseq
          %v846 = vshrl.u32 %v845, 7
          %v847 = vsub.s32 %v844, %v846
          %v848 = vrot.slane %v834, %v847
          %v849 = vcombine.low %v816, %v832
          %v850 = vcombine.high %v816, %v832
          %v852 = vunpack.c.l.s4 1934713408
          %v853 = vunpack.c.0.s8 %v852
          %v854 = vlaneseq
          %v855 = vshrl.u32 %v854, 7
          %v856 = vsub.s32 %v853, %v855
          %v857 = vrot.slane %v849, %v856
          %v859 = vunpack.c.l.s4 1934713408
          %v860 = vunpack.c.0.s8 %v859
          %v861 = vlaneseq
          %v862 = vshrl.u32 %v861, 7
          %v863 = vsub.s32 %v860, %v862
          %v864 = vrot.slane %v850, %v863
          %v865 = vcombine.high %v841, 0.0
          %v866 = vcombine.high %v848, 0.0
          %v867 = vcombine.high %v857, 0.0
          %v868 = vcombine.high %v864, 0.0
          %v869 = vcombine.low %v780, %v788
          %v870 = vcombine.high %v780, %v788
          %v872 = vunpack.c.l.s4 1983009808
          %v873 = vunpack.c.0.s8 %v872
          %v874 = vlaneseq
          %v875 = vshrl.u32 %v874, 7
          %v876 = vsub.s32 %v873, %v875
          %v877 = vrot.slane %v869, %v876
          %v879 = vunpack.c.l.s4 1983009808
          %v880 = vunpack.c.0.s8 %v879
          %v881 = vlaneseq
          %v882 = vshrl.u32 %v881, 7
          %v883 = vsub.s32 %v880, %v882
          %v884 = vrot.slane %v870, %v883
          %v885 = vcombine.low %v784, %v792
          %v886 = vcombine.high %v784, %v792
          %v888 = vunpack.c.l.s4 1983009808
          %v889 = vunpack.c.0.s8 %v888
          %v890 = vlaneseq
          %v891 = vshrl.u32 %v890, 7
          %v892 = vsub.s32 %v889, %v891
          %v893 = vrot.slane %v885, %v892
          %v895 = vunpack.c.l.s4 1983009808
          %v896 = vunpack.c.0.s8 %v895
          %v897 = vlaneseq
          %v898 = vshrl.u32 %v897, 7
          %v899 = vsub.s32 %v896, %v898
          %v900 = vrot.slane %v886, %v899
          %v901 = vcombine.low %v877, %v893
          %v902 = vcombine.high %v877, %v893
          %v904 = vunpack.c.l.s4 1934713408
          %v905 = vunpack.c.0.s8 %v904
          %v906 = vlaneseq
          %v907 = vshrl.u32 %v906, 7
          %v908 = vsub.s32 %v905, %v907
          %v909 = vrot.slane %v901, %v908
          %v911 = vunpack.c.l.s4 1934713408
          %v912 = vunpack.c.0.s8 %v911
          %v913 = vlaneseq
          %v914 = vshrl.u32 %v913, 7
          %v915 = vsub.s32 %v912, %v914
          %v916 = vrot.slane %v902, %v915
          %v917 = vcombine.low %v884, %v900
          %v918 = vcombine.high %v884, %v900
          %v920 = vunpack.c.l.s4 1934713408
          %v921 = vunpack.c.0.s8 %v920
          %v922 = vlaneseq
          %v923 = vshrl.u32 %v922, 7
          %v924 = vsub.s32 %v921, %v923
          %v925 = vrot.slane %v917, %v924
          %v927 = vunpack.c.l.s4 1934713408
          %v928 = vunpack.c.0.s8 %v927
          %v929 = vlaneseq
          %v930 = vshrl.u32 %v929, 7
          %v931 = vsub.s32 %v928, %v930
          %v932 = vrot.slane %v918, %v931
          %v933 = vcombine.high %v909, 0.0
          %v934 = vcombine.high %v916, 0.0
          %v935 = vcombine.high %v925, 0.0
          %v936 = vcombine.high %v932, 0.0
          %v937 = vcombine.low %v841, %v848
          %v939 = vunpack.c.l.s4 1983009808
          %v940 = vunpack.c.0.s8 %v939
          %v941 = vlaneseq
          %v942 = vshrl.u32 %v941, 7
          %v943 = vsub.s32 %v940, %v942
          %v944 = vrot.slane %v937, %v943
          %v945 = vcombine.low %v865, %v866
          %v947 = vunpack.c.l.s4 1983009808
          %v948 = vunpack.c.0.s8 %v947
          %v949 = vlaneseq
          %v950 = vshrl.u32 %v949, 7
          %v951 = vsub.s32 %v948, %v950
          %v952 = vrot.slane %v945, %v951
          %v953 = vcombine.low %v857, %v864
          %v955 = vunpack.c.l.s4 1983009808
          %v956 = vunpack.c.0.s8 %v955
          %v957 = vlaneseq
          %v958 = vshrl.u32 %v957, 7
          %v959 = vsub.s32 %v956, %v958
          %v960 = vrot.slane %v953, %v959
          %v961 = vcombine.low %v867, %v868
          %v963 = vunpack.c.l.s4 1983009808
          %v964 = vunpack.c.0.s8 %v963
          %v965 = vlaneseq
          %v966 = vshrl.u32 %v965, 7
          %v967 = vsub.s32 %v964, %v966
          %v968 = vrot.slane %v961, %v967
          %v969 = vcombine.low %v944, %v952
          %v970 = vcombine.high %v944, %v952
          %v972 = vunpack.c.l.s4 1934713408
          %v973 = vunpack.c.0.s8 %v972
          %v974 = vlaneseq
          %v975 = vshrl.u32 %v974, 7
          %v976 = vsub.s32 %v973, %v975
          %v977 = vrot.slane %v969, %v976
          %v979 = vunpack.c.l.s4 1934713408
          %v980 = vunpack.c.0.s8 %v979
          %v981 = vlaneseq
          %v982 = vshrl.u32 %v981, 7
          %v983 = vsub.s32 %v980, %v982
          %v984 = vrot.slane %v970, %v983
          %v985 = vcombine.low %v960, %v968
          %v986 = vcombine.high %v960, %v968
          %v988 = vunpack.c.l.s4 1934713408
          %v989 = vunpack.c.0.s8 %v988
          %v990 = vlaneseq
          %v991 = vshrl.u32 %v990, 7
          %v992 = vsub.s32 %v989, %v991
          %v993 = vrot.slane %v985, %v992
          %v995 = vunpack.c.l.s4 1934713408
          %v996 = vunpack.c.0.s8 %v995
          %v997 = vlaneseq
          %v998 = vshrl.u32 %v997, 7
          %v999 = vsub.s32 %v996, %v998
          %v1000 = vrot.slane %v986, %v999
          %v1001 = vcombine.low %v977, %v993
          %v1002 = vcombine.high %v977, %v993
          %v1003 = vcombine.low %v984, %v1000
          %v1004 = vcombine.high %v984, %v1000
          %v1005 = vcombine.low %v909, %v916
          %v1007 = vunpack.c.l.s4 1983009808
          %v1008 = vunpack.c.0.s8 %v1007
          %v1009 = vlaneseq
          %v1010 = vshrl.u32 %v1009, 7
          %v1011 = vsub.s32 %v1008, %v1010
          %v1012 = vrot.slane %v1005, %v1011
          %v1013 = vcombine.low %v933, %v934
          %v1015 = vunpack.c.l.s4 1983009808
          %v1016 = vunpack.c.0.s8 %v1015
          %v1017 = vlaneseq
          %v1018 = vshrl.u32 %v1017, 7
          %v1019 = vsub.s32 %v1016, %v1018
          %v1020 = vrot.slane %v1013, %v1019
          %v1021 = vcombine.low %v925, %v932
          %v1023 = vunpack.c.l.s4 1983009808
          %v1024 = vunpack.c.0.s8 %v1023
          %v1025 = vlaneseq
          %v1026 = vshrl.u32 %v1025, 7
          %v1027 = vsub.s32 %v1024, %v1026
          %v1028 = vrot.slane %v1021, %v1027
          %v1029 = vcombine.low %v935, %v936
          %v1031 = vunpack.c.l.s4 1983009808
          %v1032 = vunpack.c.0.s8 %v1031
          %v1033 = vlaneseq
          %v1034 = vshrl.u32 %v1033, 7
          %v1035 = vsub.s32 %v1032, %v1034
          %v1036 = vrot.slane %v1029, %v1035
          %v1037 = vcombine.low %v1012, %v1020
          %v1038 = vcombine.high %v1012, %v1020
          %v1040 = vunpack.c.l.s4 1934713408
          %v1041 = vunpack.c.0.s8 %v1040
          %v1042 = vlaneseq
          %v1043 = vshrl.u32 %v1042, 7
          %v1044 = vsub.s32 %v1041, %v1043
          %v1045 = vrot.slane %v1037, %v1044
          %v1047 = vunpack.c.l.s4 1934713408
          %v1048 = vunpack.c.0.s8 %v1047
          %v1049 = vlaneseq
          %v1050 = vshrl.u32 %v1049, 7
          %v1051 = vsub.s32 %v1048, %v1050
          %v1052 = vrot.slane %v1038, %v1051
          %v1053 = vcombine.low %v1028, %v1036
          %v1054 = vcombine.high %v1028, %v1036
          %v1056 = vunpack.c.l.s4 1934713408
          %v1057 = vunpack.c.0.s8 %v1056
          %v1058 = vlaneseq
          %v1059 = vshrl.u32 %v1058, 7
          %v1060 = vsub.s32 %v1057, %v1059
          %v1061 = vrot.slane %v1053, %v1060
          %v1063 = vunpack.c.l.s4 1934713408
          %v1064 = vunpack.c.0.s8 %v1063
          %v1065 = vlaneseq
          %v1066 = vshrl.u32 %v1065, 7
          %v1067 = vsub.s32 %v1064, %v1066
          %v1068 = vrot.slane %v1054, %v1067
          %v1069 = vcombine.low %v1045, %v1061
          %v1070 = vcombine.high %v1045, %v1061
          %v1071 = vcombine.low %v1052, %v1068
          %v1072 = vcombine.high %v1052, %v1068
          %1073 = vst.msk [vmem:[#allocation4] sm:$0xff] %vm768, %v1001
          %1074 = vst.msk [vmem:[#allocation4 + $0x8] sm:$0xff] %vm768, %v1069
          %1075 = vst.msk [vmem:[#allocation4 + $0x10] sm:$0xff] %vm768, %v1002
          %1076 = vst.msk [vmem:[#allocation4 + $0x18] sm:$0xff] %vm768, %v1070
          %1077 = vst.msk [vmem:[#allocation4 + $0x20] sm:$0xff] %vm768, %v1003
          %1078 = vst.msk [vmem:[#allocation4 + $0x28] sm:$0xff] %vm768, %v1071
          %1079 = vst.msk [vmem:[#allocation4 + $0x30] sm:$0xff] %vm768, %v1004
          %1080 = vst.msk [vmem:[#allocation4 + $0x38] sm:$0xff] %vm768, %v1072
        $region52: #{tpu_custom_call.1} parent=39 // pred_fallthru
          _
        %s1081 = smul.u32 %s33, 8
        %s1082 = scalar_lea.vmem [#allocation2], %s1081
        %v1083 = vld [vmem:[%s1082] sm:$0xff]
        %1085 = vrot.lane.b32.xlu0 %v1083, 120
        %v1086 = vpop.permute.xlu0 %1085
        %1088 = vrot.lane.b32.xlu0 %v1083, 112
        %v1089 = vpop.permute.xlu0 %1088
        %1091 = vrot.lane.b32.xlu0 %v1083, 104
        %v1092 = vpop.permute.xlu0 %1091
        %v1094 = vcombine.low %v1083, %v1089
        %v1095 = vcombine.high %v1083, %v1089
        %v1097 = vunpack.c.l.s4 1983009808
        %v1098 = vunpack.c.0.s8 %v1097
        %v1099 = vlaneseq
        %v1100 = vshrl.u32 %v1099, 7
        %v1101 = vsub.s32 %v1098, %v1100
        %v1102 = vrot.slane %v1094, %v1101
        %v1104 = vunpack.c.l.s4 1983009808
        %v1105 = vunpack.c.0.s8 %v1104
        %v1106 = vlaneseq
        %v1107 = vshrl.u32 %v1106, 7
        %v1108 = vsub.s32 %v1105, %v1107
        %v1109 = vrot.slane %v1095, %v1108
        %v1110 = vcombine.low %v1086, %v1092
        %v1111 = vcombine.high %v1086, %v1092
        %v1113 = vunpack.c.l.s4 1983009808
        %v1114 = vunpack.c.0.s8 %v1113
        %v1115 = vlaneseq
        %v1116 = vshrl.u32 %v1115, 7
        %v1117 = vsub.s32 %v1114, %v1116
        %v1118 = vrot.slane %v1110, %v1117
        %v1120 = vunpack.c.l.s4 1983009808
        %v1121 = vunpack.c.0.s8 %v1120
        %v1122 = vlaneseq
        %v1123 = vshrl.u32 %v1122, 7
        %v1124 = vsub.s32 %v1121, %v1123
        %v1125 = vrot.slane %v1111, %v1124
        %v1126 = vcombine.low %v1102, %v1118
        %v1127 = vcombine.high %v1102, %v1118
        %v1129 = vunpack.c.l.s4 1934713408
        %v1130 = vunpack.c.0.s8 %v1129
        %v1131 = vlaneseq
        %v1132 = vshrl.u32 %v1131, 7
        %v1133 = vsub.s32 %v1130, %v1132
        %v1134 = vrot.slane %v1126, %v1133
        %v1136 = vunpack.c.l.s4 1934713408
        %v1137 = vunpack.c.0.s8 %v1136
        %v1138 = vlaneseq
        %v1139 = vshrl.u32 %v1138, 7
        %v1140 = vsub.s32 %v1137, %v1139
        %v1141 = vrot.slane %v1127, %v1140
        %v1142 = vcombine.low %v1109, %v1125
        %v1143 = vcombine.high %v1109, %v1125
        %v1145 = vunpack.c.l.s4 1934713408
        %v1146 = vunpack.c.0.s8 %v1145
        %v1147 = vlaneseq
        %v1148 = vshrl.u32 %v1147, 7
        %v1149 = vsub.s32 %v1146, %v1148
        %v1150 = vrot.slane %v1142, %v1149
        %v1152 = vunpack.c.l.s4 1934713408
        %v1153 = vunpack.c.0.s8 %v1152
        %v1154 = vlaneseq
        %v1155 = vshrl.u32 %v1154, 7
        %v1156 = vsub.s32 %v1153, %v1155
        %v1157 = vrot.slane %v1143, %v1156
        %v1158 = vcombine.high %v1134, 0.0
        %v1159 = vcombine.high %v1141, 0.0
        %v1160 = vcombine.high %v1150, 0.0
        %v1161 = vcombine.high %v1157, 0.0
        %v1162 = vcombine.low %v1134, %v1141
        %v1164 = vunpack.c.l.s4 1983009808
        %v1165 = vunpack.c.0.s8 %v1164
        %v1166 = vlaneseq
        %v1167 = vshrl.u32 %v1166, 7
        %v1168 = vsub.s32 %v1165, %v1167
        %v1169 = vrot.slane %v1162, %v1168
        %v1170 = vcombine.low %v1158, %v1159
        %v1172 = vunpack.c.l.s4 1983009808
        %v1173 = vunpack.c.0.s8 %v1172
        %v1174 = vlaneseq
        %v1175 = vshrl.u32 %v1174, 7
        %v1176 = vsub.s32 %v1173, %v1175
        %v1177 = vrot.slane %v1170, %v1176
        %v1178 = vcombine.low %v1150, %v1157
        %v1180 = vunpack.c.l.s4 1983009808
        %v1181 = vunpack.c.0.s8 %v1180
        %v1182 = vlaneseq
        %v1183 = vshrl.u32 %v1182, 7
        %v1184 = vsub.s32 %v1181, %v1183
        %v1185 = vrot.slane %v1178, %v1184
        %v1186 = vcombine.low %v1160, %v1161
        %v1188 = vunpack.c.l.s4 1983009808
        %v1189 = vunpack.c.0.s8 %v1188
        %v1190 = vlaneseq
        %v1191 = vshrl.u32 %v1190, 7
        %v1192 = vsub.s32 %v1189, %v1191
        %v1193 = vrot.slane %v1186, %v1192
        %v1194 = vcombine.low %v1169, %v1177
        %v1195 = vcombine.high %v1169, %v1177
        %v1197 = vunpack.c.l.s4 1934713408
        %v1198 = vunpack.c.0.s8 %v1197
        %v1199 = vlaneseq
        %v1200 = vshrl.u32 %v1199, 7
        %v1201 = vsub.s32 %v1198, %v1200
        %v1202 = vrot.slane %v1194, %v1201
        %v1204 = vunpack.c.l.s4 1934713408
        %v1205 = vunpack.c.0.s8 %v1204
        %v1206 = vlaneseq
        %v1207 = vshrl.u32 %v1206, 7
        %v1208 = vsub.s32 %v1205, %v1207
        %v1209 = vrot.slane %v1195, %v1208
        %v1210 = vcombine.low %v1185, %v1193
        %v1211 = vcombine.high %v1185, %v1193
        %v1213 = vunpack.c.l.s4 1934713408
        %v1214 = vunpack.c.0.s8 %v1213
        %v1215 = vlaneseq
        %v1216 = vshrl.u32 %v1215, 7
        %v1217 = vsub.s32 %v1214, %v1216
        %v1218 = vrot.slane %v1210, %v1217
        %v1220 = vunpack.c.l.s4 1934713408
        %v1221 = vunpack.c.0.s8 %v1220
        %v1222 = vlaneseq
        %v1223 = vshrl.u32 %v1222, 7
        %v1224 = vsub.s32 %v1221, %v1223
        %v1225 = vrot.slane %v1211, %v1224
        %v1226 = vcombine.low %v1202, %v1218
        %v1227 = vcombine.high %v1202, %v1218
        %v1228 = vcombine.low %v1209, %v1225
        %v1229 = vcombine.high %v1209, %v1225
        %v1230 = vld [vmem:[#allocation3] sm:$0xff]
        %v1231 = vld [vmem:[#allocation3 + $0x8] sm:$0xff]
        %v1232 = vld [vmem:[#allocation3 + $0x10] sm:$0xff]
        %v1233 = vld [vmem:[#allocation3 + $0x18] sm:$0xff]
        %v1234 = vld [vmem:[#allocation3 + $0x20] sm:$0xff]
        %v1235 = vld [vmem:[#allocation3 + $0x28] sm:$0xff]
        %v1236 = vld [vmem:[#allocation3 + $0x30] sm:$0xff]
        %v1237 = vld [vmem:[#allocation3 + $0x38] sm:$0xff]
        %v1238 = vld [vmem:[#allocation4] sm:$0xff]
        %v1239 = vld [vmem:[#allocation4 + $0x8] sm:$0xff]
        %v1240 = vld [vmem:[#allocation4 + $0x10] sm:$0xff]
        %v1241 = vld [vmem:[#allocation4 + $0x18] sm:$0xff]
        %v1242 = vld [vmem:[#allocation4 + $0x20] sm:$0xff]
        %v1243 = vld [vmem:[#allocation4 + $0x28] sm:$0xff]
        %v1244 = vld [vmem:[#allocation4 + $0x30] sm:$0xff]
        %v1245 = vld [vmem:[#allocation4 + $0x38] sm:$0xff]
        %vm1246 = vcmask 64512
        %v1248 = vsel %vm1246, %v1226, 0
        %v1251 = vsel %vm1246, %v1230, 0
        %v1254 = vsel %vm1246, %v1231, 0
        %1256 = vmatprep.subr.mxu0 0.0
        %1257 = vmatpush1.xpose.msra.mxu0 %v1251
        %1258 = vmatprep.subr.mxu0 0.0
        %1259 = vmatpush1.xpose.msra.mxu0 %v1254
        %1260 = vmatprep.subr.mxu0 0.0
        %1261 = vmatpush1.xpose.msra.mxu0 0.0
        %1262 = vmatprep.subr.mxu0 0.0
        %1263 = vmatpush1.xpose.msra.mxu0 0.0
        %1264 = vmatprep.subr.mxu0 0.0
        %1265 = vmatpush1.xpose.msra.mxu0 0.0
        %1266 = vmatprep.subr.mxu0 0.0
        %1267 = vmatpush1.xpose.msra.mxu0 0.0
        %1268 = vmatprep.subr.mxu0 0.0
        %1269 = vmatpush1.xpose.msra.mxu0 0.0
        %1270 = vmatprep.subr.mxu0 0.0
        %1271 = vmatpush1.xpose.msra.mxu0 0.0
        %1272 = vmatprep.subr.mxu0 0.0
        %1273 = vmatpush1.xpose.msra.mxu0 0.0
        %1274 = vmatprep.subr.mxu0 0.0
        %1275 = vmatpush1.xpose.msra.mxu0 0.0
        %1276 = vmatprep.subr.mxu0 0.0
        %1277 = vmatpush1.xpose.msra.mxu0 0.0
        %1278 = vmatprep.subr.mxu0 0.0
        %1279 = vmatpush1.xpose.msra.mxu0 0.0
        %1280 = vmatprep.subr.mxu0 0.0
        %1281 = vmatpush1.xpose.msra.mxu0 0.0
        %1282 = vmatprep.subr.mxu0 0.0
        %1283 = vmatpush1.xpose.msra.mxu0 0.0
        %1284 = vmatprep.subr.mxu0 0.0
        %1285 = vmatpush1.xpose.msra.mxu0 0.0
        %1286 = vmatprep.subr.mxu0 0.0
        %1287 = vmatpush1.xpose.msra.mxu0 0.0
        %1288 = vmatprep.subr.mxu0 0.0
        %1289 = vmatpush1.xpose.msra.mxu0 0.0
        %1290 = vmatprep.subr.mxu0 0.0
        %1291 = vmatpush1.xpose.msra.mxu0 0.0
        %1292 = vmatprep.subr.mxu0 0.0
        %1293 = vmatpush1.xpose.msra.mxu0 0.0
        %1294 = vmatprep.subr.mxu0 0.0
        %1295 = vmatpush1.xpose.msra.mxu0 0.0
        %1296 = vmatprep.subr.mxu0 0.0
        %1297 = vmatpush1.xpose.msra.mxu0 0.0
        %1298 = vmatprep.subr.mxu0 0.0
        %1299 = vmatpush1.xpose.msra.mxu0 0.0
        %1300 = vmatprep.subr.mxu0 0.0
        %1301 = vmatpush1.xpose.msra.mxu0 0.0
        %1302 = vmatprep.subr.mxu0 0.0
        %1303 = vmatpush1.xpose.msra.mxu0 0.0
        %1304 = vmatprep.subr.mxu0 0.0
        %1305 = vmatpush1.xpose.msra.mxu0 0.0
        %1306 = vmatprep.subr.mxu0 0.0
        %1307 = vmatpush1.xpose.msra.mxu0 0.0
        %1308 = vmatprep.subr.mxu0 0.0
        %1309 = vmatpush1.xpose.msra.mxu0 0.0
        %1310 = vmatprep.subr.mxu0 0.0
        %1311 = vmatpush1.xpose.msra.mxu0 0.0
        %1312 = vmatprep.subr.mxu0 0.0
        %1313 = vmatpush1.xpose.msra.mxu0 0.0
        %1314 = vmatprep.subr.mxu0 0.0
        %1315 = vmatpush1.xpose.msra.mxu0 0.0
        %1316 = vmatprep.subr.mxu0 0.0
        %1317 = vmatpush1.xpose.msra.mxu0 0.0
        %1318 = vmatprep.subr.mxu0 0.0
        %1319 = vmatpush1.xpose.msra.mxu0 0.0
        %1320 = vmatprep.mubr.f32.mxu0 0.0
        %1321 = vmatmul.mubr.f32.gmra.mrb[0].mxu0 %v1248
        %v1322 = vpop.f32.mrb[0].mxu0
        %v1323 = vadd.f32 0.0, %v1322
        %v1324 = vpop.f32.mrb[0].mxu0
        %1325 = vdwg.mxu0
        %v1327 = vsel %vm1246, %v1227, 0
        %v1330 = vsel %vm1246, %v1232, 0
        %v1333 = vsel %vm1246, %v1233, 0
        %1335 = vmatprep.subr.mxu0 0.0
        %1336 = vmatpush1.xpose.msra.mxu0 %v1330
        %1337 = vmatprep.subr.mxu0 0.0
        %1338 = vmatpush1.xpose.msra.mxu0 %v1333
        %1339 = vmatprep.subr.mxu0 0.0
        %1340 = vmatpush1.xpose.msra.mxu0 0.0
        %1341 = vmatprep.subr.mxu0 0.0
        %1342 = vmatpush1.xpose.msra.mxu0 0.0
        %1343 = vmatprep.subr.mxu0 0.0
        %1344 = vmatpush1.xpose.msra.mxu0 0.0
        %1345 = vmatprep.subr.mxu0 0.0
        %1346 = vmatpush1.xpose.msra.mxu0 0.0
        %1347 = vmatprep.subr.mxu0 0.0
        %1348 = vmatpush1.xpose.msra.mxu0 0.0
        %1349 = vmatprep.subr.mxu0 0.0
        %1350 = vmatpush1.xpose.msra.mxu0 0.0
        %1351 = vmatprep.subr.mxu0 0.0
        %1352 = vmatpush1.xpose.msra.mxu0 0.0
        %1353 = vmatprep.subr.mxu0 0.0
        %1354 = vmatpush1.xpose.msra.mxu0 0.0
        %1355 = vmatprep.subr.mxu0 0.0
        %1356 = vmatpush1.xpose.msra.mxu0 0.0
        %1357 = vmatprep.subr.mxu0 0.0
        %1358 = vmatpush1.xpose.msra.mxu0 0.0
        %1359 = vmatprep.subr.mxu0 0.0
        %1360 = vmatpush1.xpose.msra.mxu0 0.0
        %1361 = vmatprep.subr.mxu0 0.0
        %1362 = vmatpush1.xpose.msra.mxu0 0.0
        %1363 = vmatprep.subr.mxu0 0.0
        %1364 = vmatpush1.xpose.msra.mxu0 0.0
        %1365 = vmatprep.subr.mxu0 0.0
        %1366 = vmatpush1.xpose.msra.mxu0 0.0
        %1367 = vmatprep.subr.mxu0 0.0
        %1368 = vmatpush1.xpose.msra.mxu0 0.0
        %1369 = vmatprep.subr.mxu0 0.0
        %1370 = vmatpush1.xpose.msra.mxu0 0.0
        %1371 = vmatprep.subr.mxu0 0.0
        %1372 = vmatpush1.xpose.msra.mxu0 0.0
        %1373 = vmatprep.subr.mxu0 0.0
        %1374 = vmatpush1.xpose.msra.mxu0 0.0
        %1375 = vmatprep.subr.mxu0 0.0
        %1376 = vmatpush1.xpose.msra.mxu0 0.0
        %1377 = vmatprep.subr.mxu0 0.0
        %1378 = vmatpush1.xpose.msra.mxu0 0.0
        %1379 = vmatprep.subr.mxu0 0.0
        %1380 = vmatpush1.xpose.msra.mxu0 0.0
        %1381 = vmatprep.subr.mxu0 0.0
        %1382 = vmatpush1.xpose.msra.mxu0 0.0
        %1383 = vmatprep.subr.mxu0 0.0
        %1384 = vmatpush1.xpose.msra.mxu0 0.0
        %1385 = vmatprep.subr.mxu0 0.0
        %1386 = vmatpush1.xpose.msra.mxu0 0.0
        %1387 = vmatprep.subr.mxu0 0.0
        %1388 = vmatpush1.xpose.msra.mxu0 0.0
        %1389 = vmatprep.subr.mxu0 0.0
        %1390 = vmatpush1.xpose.msra.mxu0 0.0
        %1391 = vmatprep.subr.mxu0 0.0
        %1392 = vmatpush1.xpose.msra.mxu0 0.0
        %1393 = vmatprep.subr.mxu0 0.0
        %1394 = vmatpush1.xpose.msra.mxu0 0.0
        %1395 = vmatprep.subr.mxu0 0.0
        %1396 = vmatpush1.xpose.msra.mxu0 0.0
        %1397 = vmatprep.subr.mxu0 0.0
        %1398 = vmatpush1.xpose.msra.mxu0 0.0
        %1399 = vmatprep.mubr.f32.mxu0 0.0
        %1400 = vmatmul.mubr.f32.gmra.mrb[0].mxu0 %v1327
        %v1401 = vpop.f32.mrb[0].mxu0
        %v1402 = vadd.f32 0.0, %v1401
        %v1403 = vpop.f32.mrb[0].mxu0
        %1404 = vdwg.mxu0
        %v1406 = vsel %vm1246, %v1228, 0
        %v1409 = vsel %vm1246, %v1234, 0
        %v1412 = vsel %vm1246, %v1235, 0
        %1414 = vmatprep.subr.mxu0 0.0
        %1415 = vmatpush1.xpose.msra.mxu0 %v1409
        %1416 = vmatprep.subr.mxu0 0.0
        %1417 = vmatpush1.xpose.msra.mxu0 %v1412
        %1418 = vmatprep.subr.mxu0 0.0
        %1419 = vmatpush1.xpose.msra.mxu0 0.0
        %1420 = vmatprep.subr.mxu0 0.0
        %1421 = vmatpush1.xpose.msra.mxu0 0.0
        %1422 = vmatprep.subr.mxu0 0.0
        %1423 = vmatpush1.xpose.msra.mxu0 0.0
        %1424 = vmatprep.subr.mxu0 0.0
        %1425 = vmatpush1.xpose.msra.mxu0 0.0
        %1426 = vmatprep.subr.mxu0 0.0
        %1427 = vmatpush1.xpose.msra.mxu0 0.0
        %1428 = vmatprep.subr.mxu0 0.0
        %1429 = vmatpush1.xpose.msra.mxu0 0.0
        %1430 = vmatprep.subr.mxu0 0.0
        %1431 = vmatpush1.xpose.msra.mxu0 0.0
        %1432 = vmatprep.subr.mxu0 0.0
        %1433 = vmatpush1.xpose.msra.mxu0 0.0
        %1434 = vmatprep.subr.mxu0 0.0
        %1435 = vmatpush1.xpose.msra.mxu0 0.0
        %1436 = vmatprep.subr.mxu0 0.0
        %1437 = vmatpush1.xpose.msra.mxu0 0.0
        %1438 = vmatprep.subr.mxu0 0.0
        %1439 = vmatpush1.xpose.msra.mxu0 0.0
        %1440 = vmatprep.subr.mxu0 0.0
        %1441 = vmatpush1.xpose.msra.mxu0 0.0
        %1442 = vmatprep.subr.mxu0 0.0
        %1443 = vmatpush1.xpose.msra.mxu0 0.0
        %1444 = vmatprep.subr.mxu0 0.0
        %1445 = vmatpush1.xpose.msra.mxu0 0.0
        %1446 = vmatprep.subr.mxu0 0.0
        %1447 = vmatpush1.xpose.msra.mxu0 0.0
        %1448 = vmatprep.subr.mxu0 0.0
        %1449 = vmatpush1.xpose.msra.mxu0 0.0
        %1450 = vmatprep.subr.mxu0 0.0
        %1451 = vmatpush1.xpose.msra.mxu0 0.0
        %1452 = vmatprep.subr.mxu0 0.0
        %1453 = vmatpush1.xpose.msra.mxu0 0.0
        %1454 = vmatprep.subr.mxu0 0.0
        %1455 = vmatpush1.xpose.msra.mxu0 0.0
        %1456 = vmatprep.subr.mxu0 0.0
        %1457 = vmatpush1.xpose.msra.mxu0 0.0
        %1458 = vmatprep.subr.mxu0 0.0
        %1459 = vmatpush1.xpose.msra.mxu0 0.0
        %1460 = vmatprep.subr.mxu0 0.0
        %1461 = vmatpush1.xpose.msra.mxu0 0.0
        %1462 = vmatprep.subr.mxu0 0.0
        %1463 = vmatpush1.xpose.msra.mxu0 0.0
        %1464 = vmatprep.subr.mxu0 0.0
        %1465 = vmatpush1.xpose.msra.mxu0 0.0
        %1466 = vmatprep.subr.mxu0 0.0
        %1467 = vmatpush1.xpose.msra.mxu0 0.0
        %1468 = vmatprep.subr.mxu0 0.0
        %1469 = vmatpush1.xpose.msra.mxu0 0.0
        %1470 = vmatprep.subr.mxu0 0.0
        %1471 = vmatpush1.xpose.msra.mxu0 0.0
        %1472 = vmatprep.subr.mxu0 0.0
        %1473 = vmatpush1.xpose.msra.mxu0 0.0
        %1474 = vmatprep.subr.mxu0 0.0
        %1475 = vmatpush1.xpose.msra.mxu0 0.0
        %1476 = vmatprep.subr.mxu0 0.0
        %1477 = vmatpush1.xpose.msra.mxu0 0.0
        %1478 = vmatprep.mubr.f32.mxu0 0.0
        %1479 = vmatmul.mubr.f32.gmra.mrb[0].mxu0 %v1406
        %v1480 = vpop.f32.mrb[0].mxu0
        %v1481 = vadd.f32 0.0, %v1480
        %v1482 = vpop.f32.mrb[0].mxu0
        %1483 = vdwg.mxu0
        %v1485 = vsel %vm1246, %v1229, 0
        %v1488 = vsel %vm1246, %v1236, 0
        %v1491 = vsel %vm1246, %v1237, 0
        %1493 = vmatprep.subr.mxu0 0.0
        %1494 = vmatpush1.xpose.msra.mxu0 %v1488
        %1495 = vmatprep.subr.mxu0 0.0
        %1496 = vmatpush1.xpose.msra.mxu0 %v1491
        %1497 = vmatprep.subr.mxu0 0.0
        %1498 = vmatpush1.xpose.msra.mxu0 0.0
        %1499 = vmatprep.subr.mxu0 0.0
        %1500 = vmatpush1.xpose.msra.mxu0 0.0
        %1501 = vmatprep.subr.mxu0 0.0
        %1502 = vmatpush1.xpose.msra.mxu0 0.0
        %1503 = vmatprep.subr.mxu0 0.0
        %1504 = vmatpush1.xpose.msra.mxu0 0.0
        %1505 = vmatprep.subr.mxu0 0.0
        %1506 = vmatpush1.xpose.msra.mxu0 0.0
        %1507 = vmatprep.subr.mxu0 0.0
        %1508 = vmatpush1.xpose.msra.mxu0 0.0
        %1509 = vmatprep.subr.mxu0 0.0
        %1510 = vmatpush1.xpose.msra.mxu0 0.0
        %1511 = vmatprep.subr.mxu0 0.0
        %1512 = vmatpush1.xpose.msra.mxu0 0.0
        %1513 = vmatprep.subr.mxu0 0.0
        %1514 = vmatpush1.xpose.msra.mxu0 0.0
        %1515 = vmatprep.subr.mxu0 0.0
        %1516 = vmatpush1.xpose.msra.mxu0 0.0
        %1517 = vmatprep.subr.mxu0 0.0
        %1518 = vmatpush1.xpose.msra.mxu0 0.0
        %1519 = vmatprep.subr.mxu0 0.0
        %1520 = vmatpush1.xpose.msra.mxu0 0.0
        %1521 = vmatprep.subr.mxu0 0.0
        %1522 = vmatpush1.xpose.msra.mxu0 0.0
        %1523 = vmatprep.subr.mxu0 0.0
        %1524 = vmatpush1.xpose.msra.mxu0 0.0
        %1525 = vmatprep.subr.mxu0 0.0
        %1526 = vmatpush1.xpose.msra.mxu0 0.0
        %1527 = vmatprep.subr.mxu0 0.0
        %1528 = vmatpush1.xpose.msra.mxu0 0.0
        %1529 = vmatprep.subr.mxu0 0.0
        %1530 = vmatpush1.xpose.msra.mxu0 0.0
        %1531 = vmatprep.subr.mxu0 0.0
        %1532 = vmatpush1.xpose.msra.mxu0 0.0
        %1533 = vmatprep.subr.mxu0 0.0
        %1534 = vmatpush1.xpose.msra.mxu0 0.0
        %1535 = vmatprep.subr.mxu0 0.0
        %1536 = vmatpush1.xpose.msra.mxu0 0.0
        %1537 = vmatprep.subr.mxu0 0.0
        %1538 = vmatpush1.xpose.msra.mxu0 0.0
        %1539 = vmatprep.subr.mxu0 0.0
        %1540 = vmatpush1.xpose.msra.mxu0 0.0
        %1541 = vmatprep.subr.mxu0 0.0
        %1542 = vmatpush1.xpose.msra.mxu0 0.0
        %1543 = vmatprep.subr.mxu0 0.0
        %1544 = vmatpush1.xpose.msra.mxu0 0.0
        %1545 = vmatprep.subr.mxu0 0.0
        %1546 = vmatpush1.xpose.msra.mxu0 0.0
        %1547 = vmatprep.subr.mxu0 0.0
        %1548 = vmatpush1.xpose.msra.mxu0 0.0
        %1549 = vmatprep.subr.mxu0 0.0
        %1550 = vmatpush1.xpose.msra.mxu0 0.0
        %1551 = vmatprep.subr.mxu0 0.0
        %1552 = vmatpush1.xpose.msra.mxu0 0.0
        %1553 = vmatprep.subr.mxu0 0.0
        %1554 = vmatpush1.xpose.msra.mxu0 0.0
        %1555 = vmatprep.subr.mxu0 0.0
        %1556 = vmatpush1.xpose.msra.mxu0 0.0
        %1557 = vmatprep.mubr.f32.mxu0 0.0
        %1558 = vmatmul.mubr.f32.gmra.mrb[0].mxu0 %v1485
        %v1559 = vpop.f32.mrb[0].mxu0
        %v1560 = vadd.f32 0.0, %v1559
        %v1561 = vpop.f32.mrb[0].mxu0
        %1562 = vdwg.mxu0
        %vm1563 = vcmask 130048
        %v1564 = vsel %vm1563, %v1323, -inf
        %1565 = vmax.xlane.f32.xlu0 %v1564
        %v1566 = vpop.xlane.xlu0 %1565
        %v1567 = vsel %vm1563, %v1402, -inf
        %1568 = vmax.xlane.f32.xlu0 %v1567
        %v1569 = vpop.xlane.xlu0 %1568
        %v1570 = vsel %vm1563, %v1481, -inf
        %1571 = vmax.xlane.f32.xlu0 %v1570
        %v1572 = vpop.xlane.xlu0 %1571
        %v1573 = vsel %vm1563, %v1560, -inf
        %1574 = vmax.xlane.f32.xlu0 %v1573
        %v1575 = vpop.xlane.xlu0 %1574
        %v1576 = vsub.f32 %v1323, %v1566
        %v1577 = vsub.f32 %v1402, %v1569
        %v1578 = vsub.f32 %v1481, %v1572
        %v1579 = vsub.f32 %v1560, %v1575
        %v1580 = vmul.f32 %v1576, 1.442695
        %v1581 = vpow.pop %v1580
        %v1582 = vmul.f32 %v1577, 1.442695
        %v1583 = vpow.pop %v1582
        %v1584 = vmul.f32 %v1578, 1.442695
        %v1585 = vpow.pop %v1584
        %v1586 = vmul.f32 %v1579, 1.442695
        %v1587 = vpow.pop %v1586
        %v1588 = vsel %vm1563, %v1581, 0.0
        %1589 = vadd.xlane.f32.xlu0 %v1588
        %v1590 = vpop.xlane.xlu0 %1589
        %v1591 = vsel %vm1563, %v1583, 0.0
        %1592 = vadd.xlane.f32.xlu0 %v1591
        %v1593 = vpop.xlane.xlu0 %1592
        %v1594 = vsel %vm1563, %v1585, 0.0
        %1595 = vadd.xlane.f32.xlu0 %v1594
        %v1596 = vpop.xlane.xlu0 %1595
        %v1597 = vsel %vm1563, %v1587, 0.0
        %1598 = vadd.xlane.f32.xlu0 %v1597
        %v1599 = vpop.xlane.xlu0 %1598
        %v1600 = vrcp.pop %v1590
        %v1601 = vrcp.pop %v1593
        %v1602 = vrcp.pop %v1596
        %v1603 = vrcp.pop %v1599
        %v1604 = vmul.f32 %v1581, %v1600
        %v1605 = vmul.f32 %v1583, %v1601
        %v1606 = vmul.f32 %v1585, %v1602
        %v1607 = vmul.f32 %v1587, %v1603
        %v1609 = vsel %vm1563, %v1604, 0
        %1611 = vmatprep.subr.mxu0 0.0
        %1612 = vmatpush1.msra.mxu0 %v1238
        %1613 = vmatprep.subr.mxu0 0.0
        %1614 = vmatpush1.msra.mxu0 %v1239
        %1615 = vmatprep.subr.mxu0 0.0
        %1616 = vmatpush1.msra.mxu0 0.0
        %1617 = vmatprep.subr.mxu0 0.0
        %1618 = vmatpush1.msra.mxu0 0.0
        %1619 = vmatprep.subr.mxu0 0.0
        %1620 = vmatpush1.msra.mxu0 0.0
        %1621 = vmatprep.subr.mxu0 0.0
        %1622 = vmatpush1.msra.mxu0 0.0
        %1623 = vmatprep.subr.mxu0 0.0
        %1624 = vmatpush1.msra.mxu0 0.0
        %1625 = vmatprep.subr.mxu0 0.0
        %1626 = vmatpush1.msra.mxu0 0.0
        %1627 = vmatprep.subr.mxu0 0.0
        %1628 = vmatpush1.msra.mxu0 0.0
        %1629 = vmatprep.subr.mxu0 0.0
        %1630 = vmatpush1.msra.mxu0 0.0
        %1631 = vmatprep.subr.mxu0 0.0
        %1632 = vmatpush1.msra.mxu0 0.0
        %1633 = vmatprep.subr.mxu0 0.0
        %1634 = vmatpush1.msra.mxu0 0.0
        %1635 = vmatprep.subr.mxu0 0.0
        %1636 = vmatpush1.msra.mxu0 0.0
        %1637 = vmatprep.subr.mxu0 0.0
        %1638 = vmatpush1.msra.mxu0 0.0
        %1639 = vmatprep.subr.mxu0 0.0
        %1640 = vmatpush1.msra.mxu0 0.0
        %1641 = vmatprep.subr.mxu0 0.0
        %1642 = vmatpush1.msra.mxu0 0.0
        %1643 = vmatprep.subr.mxu0 0.0
        %1644 = vmatpush1.msra.mxu0 0.0
        %1645 = vmatprep.subr.mxu0 0.0
        %1646 = vmatpush1.msra.mxu0 0.0
        %1647 = vmatprep.subr.mxu0 0.0
        %1648 = vmatpush1.msra.mxu0 0.0
        %1649 = vmatprep.subr.mxu0 0.0
        %1650 = vmatpush1.msra.mxu0 0.0
        %1651 = vmatprep.subr.mxu0 0.0
        %1652 = vmatpush1.msra.mxu0 0.0
        %1653 = vmatprep.subr.mxu0 0.0
        %1654 = vmatpush1.msra.mxu0 0.0
        %1655 = vmatprep.subr.mxu0 0.0
        %1656 = vmatpush1.msra.mxu0 0.0
        %1657 = vmatprep.subr.mxu0 0.0
        %1658 = vmatpush1.msra.mxu0 0.0
        %1659 = vmatprep.subr.mxu0 0.0
        %1660 = vmatpush1.msra.mxu0 0.0
        %1661 = vmatprep.subr.mxu0 0.0
        %1662 = vmatpush1.msra.mxu0 0.0
        %1663 = vmatprep.subr.mxu0 0.0
        %1664 = vmatpush1.msra.mxu0 0.0
        %1665 = vmatprep.subr.mxu0 0.0
        %1666 = vmatpush1.msra.mxu0 0.0
        %1667 = vmatprep.subr.mxu0 0.0
        %1668 = vmatpush1.msra.mxu0 0.0
        %1669 = vmatprep.subr.mxu0 0.0
        %1670 = vmatpush1.msra.mxu0 0.0
        %1671 = vmatprep.subr.mxu0 0.0
        %1672 = vmatpush1.msra.mxu0 0.0
        %1673 = vmatprep.subr.mxu0 0.0
        %1674 = vmatpush1.msra.mxu0 0.0
        %1675 = vmatprep.mubr.f32.mxu0 0.0
        %1676 = vmatmul.mubr.f32.gmra.mrb[0].mxu0 %v1609
        %v1677 = vpop.f32.mrb[0].mxu0
        %v1678 = vadd.f32 0.0, %v1677
        %v1679 = vpop.f32.mrb[0].mxu0
        %1680 = vdwg.mxu0
        %v1682 = vsel %vm1563, %v1605, 0
        %1684 = vmatprep.subr.mxu0 0.0
        %1685 = vmatpush1.msra.mxu0 %v1240
        %1686 = vmatprep.subr.mxu0 0.0
        %1687 = vmatpush1.msra.mxu0 %v1241
        %1688 = vmatprep.subr.mxu0 0.0
        %1689 = vmatpush1.msra.mxu0 0.0
        %1690 = vmatprep.subr.mxu0 0.0
        %1691 = vmatpush1.msra.mxu0 0.0
        %1692 = vmatprep.subr.mxu0 0.0
        %1693 = vmatpush1.msra.mxu0 0.0
        %1694 = vmatprep.subr.mxu0 0.0
        %1695 = vmatpush1.msra.mxu0 0.0
        %1696 = vmatprep.subr.mxu0 0.0
        %1697 = vmatpush1.msra.mxu0 0.0
        %1698 = vmatprep.subr.mxu0 0.0
        %1699 = vmatpush1.msra.mxu0 0.0
        %1700 = vmatprep.subr.mxu0 0.0
        %1701 = vmatpush1.msra.mxu0 0.0
        %1702 = vmatprep.subr.mxu0 0.0
        %1703 = vmatpush1.msra.mxu0 0.0
        %1704 = vmatprep.subr.mxu0 0.0
        %1705 = vmatpush1.msra.mxu0 0.0
        %1706 = vmatprep.subr.mxu0 0.0
        %1707 = vmatpush1.msra.mxu0 0.0
        %1708 = vmatprep.subr.mxu0 0.0
        %1709 = vmatpush1.msra.mxu0 0.0
        %1710 = vmatprep.subr.mxu0 0.0
        %1711 = vmatpush1.msra.mxu0 0.0
        %1712 = vmatprep.subr.mxu0 0.0
        %1713 = vmatpush1.msra.mxu0 0.0
        %1714 = vmatprep.subr.mxu0 0.0
        %1715 = vmatpush1.msra.mxu0 0.0
        %1716 = vmatprep.subr.mxu0 0.0
        %1717 = vmatpush1.msra.mxu0 0.0
        %1718 = vmatprep.subr.mxu0 0.0
        %1719 = vmatpush1.msra.mxu0 0.0
        %1720 = vmatprep.subr.mxu0 0.0
        %1721 = vmatpush1.msra.mxu0 0.0
        %1722 = vmatprep.subr.mxu0 0.0
        %1723 = vmatpush1.msra.mxu0 0.0
        %1724 = vmatprep.subr.mxu0 0.0
        %1725 = vmatpush1.msra.mxu0 0.0
        %1726 = vmatprep.subr.mxu0 0.0
        %1727 = vmatpush1.msra.mxu0 0.0
        %1728 = vmatprep.subr.mxu0 0.0
        %1729 = vmatpush1.msra.mxu0 0.0
        %1730 = vmatprep.subr.mxu0 0.0
        %1731 = vmatpush1.msra.mxu0 0.0
        %1732 = vmatprep.subr.mxu0 0.0
        %1733 = vmatpush1.msra.mxu0 0.0
        %1734 = vmatprep.subr.mxu0 0.0
        %1735 = vmatpush1.msra.mxu0 0.0
        %1736 = vmatprep.subr.mxu0 0.0
        %1737 = vmatpush1.msra.mxu0 0.0
        %1738 = vmatprep.subr.mxu0 0.0
        %1739 = vmatpush1.msra.mxu0 0.0
        %1740 = vmatprep.subr.mxu0 0.0
        %1741 = vmatpush1.msra.mxu0 0.0
        %1742 = vmatprep.subr.mxu0 0.0
        %1743 = vmatpush1.msra.mxu0 0.0
        %1744 = vmatprep.subr.mxu0 0.0
        %1745 = vmatpush1.msra.mxu0 0.0
        %1746 = vmatprep.subr.mxu0 0.0
        %1747 = vmatpush1.msra.mxu0 0.0
        %1748 = vmatprep.mubr.f32.mxu0 0.0
        %1749 = vmatmul.mubr.f32.gmra.mrb[0].mxu0 %v1682
        %v1750 = vpop.f32.mrb[0].mxu0
        %v1751 = vadd.f32 0.0, %v1750
        %v1752 = vpop.f32.mrb[0].mxu0
        %1753 = vdwg.mxu0
        %v1755 = vsel %vm1563, %v1606, 0
        %1757 = vmatprep.subr.mxu0 0.0
        %1758 = vmatpush1.msra.mxu0 %v1242
        %1759 = vmatprep.subr.mxu0 0.0
        %1760 = vmatpush1.msra.mxu0 %v1243
        %1761 = vmatprep.subr.mxu0 0.0
        %1762 = vmatpush1.msra.mxu0 0.0
        %1763 = vmatprep.subr.mxu0 0.0
        %1764 = vmatpush1.msra.mxu0 0.0
        %1765 = vmatprep.subr.mxu0 0.0
        %1766 = vmatpush1.msra.mxu0 0.0
        %1767 = vmatprep.subr.mxu0 0.0
        %1768 = vmatpush1.msra.mxu0 0.0
        %1769 = vmatprep.subr.mxu0 0.0
        %1770 = vmatpush1.msra.mxu0 0.0
        %1771 = vmatprep.subr.mxu0 0.0
        %1772 = vmatpush1.msra.mxu0 0.0
        %1773 = vmatprep.subr.mxu0 0.0
        %1774 = vmatpush1.msra.mxu0 0.0
        %1775 = vmatprep.subr.mxu0 0.0
        %1776 = vmatpush1.msra.mxu0 0.0
        %1777 = vmatprep.subr.mxu0 0.0
        %1778 = vmatpush1.msra.mxu0 0.0
        %1779 = vmatprep.subr.mxu0 0.0
        %1780 = vmatpush1.msra.mxu0 0.0
        %1781 = vmatprep.subr.mxu0 0.0
        %1782 = vmatpush1.msra.mxu0 0.0
        %1783 = vmatprep.subr.mxu0 0.0
        %1784 = vmatpush1.msra.mxu0 0.0
        %1785 = vmatprep.subr.mxu0 0.0
        %1786 = vmatpush1.msra.mxu0 0.0
        %1787 = vmatprep.subr.mxu0 0.0
        %1788 = vmatpush1.msra.mxu0 0.0
        %1789 = vmatprep.subr.mxu0 0.0
        %1790 = vmatpush1.msra.mxu0 0.0
        %1791 = vmatprep.subr.mxu0 0.0
        %1792 = vmatpush1.msra.mxu0 0.0
        %1793 = vmatprep.subr.mxu0 0.0
        %1794 = vmatpush1.msra.mxu0 0.0
        %1795 = vmatprep.subr.mxu0 0.0
        %1796 = vmatpush1.msra.mxu0 0.0
        %1797 = vmatprep.subr.mxu0 0.0
        %1798 = vmatpush1.msra.mxu0 0.0
        %1799 = vmatprep.subr.mxu0 0.0
        %1800 = vmatpush1.msra.mxu0 0.0
        %1801 = vmatprep.subr.mxu0 0.0
        %1802 = vmatpush1.msra.mxu0 0.0
        %1803 = vmatprep.subr.mxu0 0.0
        %1804 = vmatpush1.msra.mxu0 0.0
        %1805 = vmatprep.subr.mxu0 0.0
        %1806 = vmatpush1.msra.mxu0 0.0
        %1807 = vmatprep.subr.mxu0 0.0
        %1808 = vmatpush1.msra.mxu0 0.0
        %1809 = vmatprep.subr.mxu0 0.0
        %1810 = vmatpush1.msra.mxu0 0.0
        %1811 = vmatprep.subr.mxu0 0.0
        %1812 = vmatpush1.msra.mxu0 0.0
        %1813 = vmatprep.subr.mxu0 0.0
        %1814 = vmatpush1.msra.mxu0 0.0
        %1815 = vmatprep.subr.mxu0 0.0
        %1816 = vmatpush1.msra.mxu0 0.0
        %1817 = vmatprep.subr.mxu0 0.0
        %1818 = vmatpush1.msra.mxu0 0.0
        %1819 = vmatprep.subr.mxu0 0.0
        %1820 = vmatpush1.msra.mxu0 0.0
        %1821 = vmatprep.mubr.f32.mxu0 0.0
        %1822 = vmatmul.mubr.f32.gmra.mrb[0].mxu0 %v1755
        %v1823 = vpop.f32.mrb[0].mxu0
        %v1824 = vadd.f32 0.0, %v1823
        %v1825 = vpop.f32.mrb[0].mxu0
        %1826 = vdwg.mxu0
        %v1828 = vsel %vm1563, %v1607, 0
        %1830 = vmatprep.subr.mxu0 0.0
        %1831 = vmatpush1.msra.mxu0 %v1244
        %1832 = vmatprep.subr.mxu0 0.0
        %1833 = vmatpush1.msra.mxu0 %v1245
        %1834 = vmatprep.subr.mxu0 0.0
        %1835 = vmatpush1.msra.mxu0 0.0
        %1836 = vmatprep.subr.mxu0 0.0
        %1837 = vmatpush1.msra.mxu0 0.0
        %1838 = vmatprep.subr.mxu0 0.0
        %1839 = vmatpush1.msra.mxu0 0.0
        %1840 = vmatprep.subr.mxu0 0.0
        %1841 = vmatpush1.msra.mxu0 0.0
        %1842 = vmatprep.subr.mxu0 0.0
        %1843 = vmatpush1.msra.mxu0 0.0
        %1844 = vmatprep.subr.mxu0 0.0
        %1845 = vmatpush1.msra.mxu0 0.0
        %1846 = vmatprep.subr.mxu0 0.0
        %1847 = vmatpush1.msra.mxu0 0.0
        %1848 = vmatprep.subr.mxu0 0.0
        %1849 = vmatpush1.msra.mxu0 0.0
        %1850 = vmatprep.subr.mxu0 0.0
        %1851 = vmatpush1.msra.mxu0 0.0
        %1852 = vmatprep.subr.mxu0 0.0
        %1853 = vmatpush1.msra.mxu0 0.0
        %1854 = vmatprep.subr.mxu0 0.0
        %1855 = vmatpush1.msra.mxu0 0.0
        %1856 = vmatprep.subr.mxu0 0.0
        %1857 = vmatpush1.msra.mxu0 0.0
        %1858 = vmatprep.subr.mxu0 0.0
        %1859 = vmatpush1.msra.mxu0 0.0
        %1860 = vmatprep.subr.mxu0 0.0
        %1861 = vmatpush1.msra.mxu0 0.0
        %1862 = vmatprep.subr.mxu0 0.0
        %1863 = vmatpush1.msra.mxu0 0.0
        %1864 = vmatprep.subr.mxu0 0.0
        %1865 = vmatpush1.msra.mxu0 0.0
        %1866 = vmatprep.subr.mxu0 0.0
        %1867 = vmatpush1.msra.mxu0 0.0
        %1868 = vmatprep.subr.mxu0 0.0
        %1869 = vmatpush1.msra.mxu0 0.0
        %1870 = vmatprep.subr.mxu0 0.0
        %1871 = vmatpush1.msra.mxu0 0.0
        %1872 = vmatprep.subr.mxu0 0.0
        %1873 = vmatpush1.msra.mxu0 0.0
        %1874 = vmatprep.subr.mxu0 0.0
        %1875 = vmatpush1.msra.mxu0 0.0
        %1876 = vmatprep.subr.mxu0 0.0
        %1877 = vmatpush1.msra.mxu0 0.0
        %1878 = vmatprep.subr.mxu0 0.0
        %1879 = vmatpush1.msra.mxu0 0.0
        %1880 = vmatprep.subr.mxu0 0.0
        %1881 = vmatpush1.msra.mxu0 0.0
        %1882 = vmatprep.subr.mxu0 0.0
        %1883 = vmatpush1.msra.mxu0 0.0
        %1884 = vmatprep.subr.mxu0 0.0
        %1885 = vmatpush1.msra.mxu0 0.0
        %1886 = vmatprep.subr.mxu0 0.0
        %1887 = vmatpush1.msra.mxu0 0.0
        %1888 = vmatprep.subr.mxu0 0.0
        %1889 = vmatpush1.msra.mxu0 0.0
        %1890 = vmatprep.subr.mxu0 0.0
        %1891 = vmatpush1.msra.mxu0 0.0
        %1892 = vmatprep.subr.mxu0 0.0
        %1893 = vmatpush1.msra.mxu0 0.0
        %1894 = vmatprep.mubr.f32.mxu0 0.0
        %1895 = vmatmul.mubr.f32.gmra.mrb[0].mxu0 %v1828
        %v1896 = vpop.f32.mrb[0].mxu0
        %v1897 = vadd.f32 0.0, %v1896
        %v1898 = vpop.f32.mrb[0].mxu0
        %1899 = vdwg.mxu0
        %v1900 = vcombine.low %v1678, %v1824
        %v1901 = vcombine.high %v1678, %v1824
        %v1903 = vunpack.c.l.s4 1983009808
        %v1904 = vunpack.c.0.s8 %v1903
        %v1905 = vlaneseq
        %v1906 = vshrl.u32 %v1905, 7
        %v1907 = vsub.s32 %v1904, %v1906
        %v1908 = vrot.slane %v1900, %v1907
        %v1910 = vunpack.c.l.s4 1983009808
        %v1911 = vunpack.c.0.s8 %v1910
        %v1912 = vlaneseq
        %v1913 = vshrl.u32 %v1912, 7
        %v1914 = vsub.s32 %v1911, %v1913
        %v1915 = vrot.slane %v1901, %v1914
        %v1916 = vcombine.low %v1751, %v1897
        %v1917 = vcombine.high %v1751, %v1897
        %v1919 = vunpack.c.l.s4 1983009808
        %v1920 = vunpack.c.0.s8 %v1919
        %v1921 = vlaneseq
        %v1922 = vshrl.u32 %v1921, 7
        %v1923 = vsub.s32 %v1920, %v1922
        %v1924 = vrot.slane %v1916, %v1923
        %v1926 = vunpack.c.l.s4 1983009808
        %v1927 = vunpack.c.0.s8 %v1926
        %v1928 = vlaneseq
        %v1929 = vshrl.u32 %v1928, 7
        %v1930 = vsub.s32 %v1927, %v1929
        %v1931 = vrot.slane %v1917, %v1930
        %v1932 = vcombine.low %v1908, %v1924
        %v1933 = vcombine.high %v1908, %v1924
        %v1935 = vunpack.c.l.s4 1934713408
        %v1936 = vunpack.c.0.s8 %v1935
        %v1937 = vlaneseq
        %v1938 = vshrl.u32 %v1937, 7
        %v1939 = vsub.s32 %v1936, %v1938
        %v1940 = vrot.slane %v1932, %v1939
        %v1942 = vunpack.c.l.s4 1934713408
        %v1943 = vunpack.c.0.s8 %v1942
        %v1944 = vlaneseq
        %v1945 = vshrl.u32 %v1944, 7
        %v1946 = vsub.s32 %v1943, %v1945
        %v1947 = vrot.slane %v1933, %v1946
        %v1948 = vcombine.low %v1915, %v1931
        %v1949 = vcombine.high %v1915, %v1931
        %v1951 = vunpack.c.l.s4 1934713408
        %v1952 = vunpack.c.0.s8 %v1951
        %v1953 = vlaneseq
        %v1954 = vshrl.u32 %v1953, 7
        %v1955 = vsub.s32 %v1952, %v1954
        %v1956 = vrot.slane %v1948, %v1955
        %v1958 = vunpack.c.l.s4 1934713408
        %v1959 = vunpack.c.0.s8 %v1958
        %v1960 = vlaneseq
        %v1961 = vshrl.u32 %v1960, 7
        %v1962 = vsub.s32 %v1959, %v1961
        %v1963 = vrot.slane %v1949, %v1962
        %v1964 = vcombine.high %v1940, 0.0
        %v1965 = vcombine.high %v1947, 0.0
        %v1966 = vcombine.high %v1956, 0.0
        %v1967 = vcombine.high %v1963, 0.0
        %v1968 = vcombine.low %v1940, %v1947
        %v1970 = vunpack.c.l.s4 1983009808
        %v1971 = vunpack.c.0.s8 %v1970
        %v1972 = vlaneseq
        %v1973 = vshrl.u32 %v1972, 7
        %v1974 = vsub.s32 %v1971, %v1973
        %v1975 = vrot.slane %v1968, %v1974
        %v1976 = vcombine.low %v1964, %v1965
        %v1978 = vunpack.c.l.s4 1983009808
        %v1979 = vunpack.c.0.s8 %v1978
        %v1980 = vlaneseq
        %v1981 = vshrl.u32 %v1980, 7
        %v1982 = vsub.s32 %v1979, %v1981
        %v1983 = vrot.slane %v1976, %v1982
        %v1984 = vcombine.low %v1956, %v1963
        %v1986 = vunpack.c.l.s4 1983009808
        %v1987 = vunpack.c.0.s8 %v1986
        %v1988 = vlaneseq
        %v1989 = vshrl.u32 %v1988, 7
        %v1990 = vsub.s32 %v1987, %v1989
        %v1991 = vrot.slane %v1984, %v1990
        %v1992 = vcombine.low %v1966, %v1967
        %v1994 = vunpack.c.l.s4 1983009808
        %v1995 = vunpack.c.0.s8 %v1994
        %v1996 = vlaneseq
        %v1997 = vshrl.u32 %v1996, 7
        %v1998 = vsub.s32 %v1995, %v1997
        %v1999 = vrot.slane %v1992, %v1998
        %v2000 = vcombine.low %v1975, %v1983
        %v2001 = vcombine.high %v1975, %v1983
        %v2003 = vunpack.c.l.s4 1934713408
        %v2004 = vunpack.c.0.s8 %v2003
        %v2005 = vlaneseq
        %v2006 = vshrl.u32 %v2005, 7
        %v2007 = vsub.s32 %v2004, %v2006
        %v2008 = vrot.slane %v2000, %v2007
        %v2010 = vunpack.c.l.s4 1934713408
        %v2011 = vunpack.c.0.s8 %v2010
        %v2012 = vlaneseq
        %v2013 = vshrl.u32 %v2012, 7
        %v2014 = vsub.s32 %v2011, %v2013
        %v2015 = vrot.slane %v2001, %v2014
        %v2016 = vcombine.low %v1991, %v1999
        %v2017 = vcombine.high %v1991, %v1999
        %v2019 = vunpack.c.l.s4 1934713408
        %v2020 = vunpack.c.0.s8 %v2019
        %v2021 = vlaneseq
        %v2022 = vshrl.u32 %v2021, 7
        %v2023 = vsub.s32 %v2020, %v2022
        %v2024 = vrot.slane %v2016, %v2023
        %v2026 = vunpack.c.l.s4 1934713408
        %v2027 = vunpack.c.0.s8 %v2026
        %v2028 = vlaneseq
        %v2029 = vshrl.u32 %v2028, 7
        %v2030 = vsub.s32 %v2027, %v2029
        %v2031 = vrot.slane %v2017, %v2030
        %v2032 = vcombine.low %v2008, %v2024
        %v2033 = vcombine.high %v2008, %v2024
        %v2034 = vcombine.low %v2015, %v2031
        %v2035 = vcombine.high %v2015, %v2031
        %2037 = vrot.lane.b32.xlu0 %v2033, 8
        %v2038 = vpop.permute.xlu0 %2037
        %2041 = vrot.lane.b32.xlu0 %v2034, 16
        %v2042 = vpop.permute.xlu0 %2041
        %2045 = vrot.lane.b32.xlu0 %v2035, 24
        %v2046 = vpop.permute.xlu0 %2045
        %v2048 = vsel %vm1246, %v2032, %v2038
        %v2049 = vsel %vm1563, %v2048, %v2042
        %vm2050 = vcmask 195584
        %v2051 = vsel %vm2050, %v2049, %v2046
        %vm2052 = vcmask 261120
        %2053 = vst.msk [vmem:[%s304] sm:$0xff] %vm2052, %v2051
        %2054 = vst.msk [vmem:[%s311] sm:$0xff] %vm1563, %v1604
        %2055 = vst.msk [vmem:[%s311 + $0x8] sm:$0xff] %vm1563, %v1605
        %2056 = vst.msk [vmem:[%s311 + $0x10] sm:$0xff] %vm1563, %v1606
        %2057 = vst.msk [vmem:[%s311 + $0x18] sm:$0xff] %vm1563, %v1607
        %s2058 = sand.u32 %s160, 1
        %s2059 = scalar_lea.sflag [#allocation7], %s2058
        %s2060 = sand.u32 %s160, 1
        %s2061 = smul.addr %s2060, 8
        %s2062 = scalar_lea.vmem [#allocation10], %s2061
        %s2063 = sand.u32 %s188, 1
        %s2064 = scalar_lea.sflag [#allocation12], %s2063
        %s2065 = sand.u32 %s188, 1
        %s2066 = smul.addr %s2065, 32
        %s2067 = scalar_lea.vmem [#allocation11], %s2066
        // Predicated region
        $region53: #{tpu_custom_call.1} parent=39 // pred_check
          %p2068 = pneg %p170
        $region54: #{tpu_custom_call.1} parent=39 // pred_check_branch
          %2070 = sbr.rel (%p2068) target = $region56
        $region55: #{tpu_custom_call.1} parent=39 // pred_region
          %s2072 = ssub.s32 128, 128
          %2073 = vsyncadd %s2059, %s2072
          %s2074 = smul.addr %s32, 2
          %s2075 = sadd.s32 %s33, %s2074
          %s2076 = smul.addr %s2075, 128
          %s2077 = scalar_lea.hbm %s5, %s2076
          %s2079 = sshll.u32 %s2062, 4
          %s2080 = int_to_ptr.vmem [resolvable:$true] %s2079
          %2082 = dma.vmem_to_hbm [thread:$0]  %s2080, 128, %s2077, %s2059
        $region56: #{tpu_custom_call.1} parent=39 // pred_fallthru
          _
        // Predicated region
        $region57: #{tpu_custom_call.1} parent=39 // pred_check
          %p2083 = pneg %p198
        $region58: #{tpu_custom_call.1} parent=39 // pred_check_branch
          %2085 = sbr.rel (%p2083) target = $region60
        $region59: #{tpu_custom_call.1} parent=39 // pred_region
          %s2087 = ssub.s32 512, 512
          %2088 = vsyncadd %s2064, %s2087
          %s2089 = smul.addr %s32, 8
          %s2090 = sadd.s32 %s33, %s2089
          %s2091 = smul.addr %s2090, 128
          %s2092 = scalar_lea.hbm %s6, %s2091
          %s2093 = sshll.u32 %s2067, 4
          %s2094 = int_to_ptr.vmem [resolvable:$true] %s2093
          %2099 = dma.vmem_to_hbm [thread:$0]  %s2094, 512, %s2092, %s2064, 128, 256, 8
        $region60: #{tpu_custom_call.1} parent=39 // pred_fallthru
          _
      $region40: #{tpu_custom_call.1} parent=5 // pred_fallthru
        _
      %p2100 = scmp.le.s32.totalorder 2, %s23
      // Predicated region
      $region61: #{tpu_custom_call.1} parent=5 // pred_check
        %p2101 = pneg %p2100
      $region62: #{tpu_custom_call.1} parent=5 // pred_check_branch
        %2103 = sbr.rel (%p2101) target = $region64
      $region63: #{tpu_custom_call.1} parent=5 // pred_region
        %s2104 = ssub.s32 %s23, 2
        // Predicated region
        $region65: #{tpu_custom_call.1} parent=63 // pred_check
          %p2105 = pneg %p176
        $region66: #{tpu_custom_call.1} parent=63 // pred_check_branch
          %2107 = sbr.rel (%p2105) target = $region68
        $region67: #{tpu_custom_call.1} parent=63 // pred_region
          %s2108 = sand.u32 %s161, 1
          %s2109 = scalar_lea.sflag [#allocation7], %s2108
          %s2110 = sand.u32 %s161, 1
          %s2111 = smul.addr %s2110, 8
          %s2112 = scalar_lea.vmem [#allocation10], %s2111
          %2113 = dma.done %s2109, 128
        $region68: #{tpu_custom_call.1} parent=63 // pred_fallthru
          _
        // Predicated region
        $region69: #{tpu_custom_call.1} parent=63 // pred_check
          %p2114 = pneg %p204
        $region70: #{tpu_custom_call.1} parent=63 // pred_check_branch
          %2116 = sbr.rel (%p2114) target = $region72
        $region71: #{tpu_custom_call.1} parent=63 // pred_region
          %s2117 = sand.u32 %s189, 1
          %s2118 = scalar_lea.sflag [#allocation12], %s2117
          %s2119 = sand.u32 %s189, 1
          %s2120 = smul.addr %s2119, 32
          %s2121 = scalar_lea.vmem [#allocation11], %s2120
          %2122 = dma.done %s2118, 512
        $region72: #{tpu_custom_call.1} parent=63 // pred_fallthru
          _
      $region64: #{tpu_custom_call.1} parent=5 // pred_fallthru
        _
    $region6: #{tpu_custom_call.1} parent=1 // loop_footer
      %s27 = sadd.s32 1, %s23
    $region7: #{tpu_custom_call.1} parent=1 // loop_footer_branch
      %22 = sbr.rel target = $region3
    $region8: #{tpu_custom_call.1} parent=1 // loop_exit
      _
    %2123 = vsyncpa [#allocation6], 1
    %s2124 = scalar_lea.sflag [#allocation6], 1
    %2125 = vsyncpa %s2124, 1
    %2126 = vsyncpa [#allocation9], 1
    %2127 = vsyncpa [#allocation7], 1
    %s2128 = scalar_lea.sflag [#allocation7], 1
    %2129 = vsyncpa %s2128, 1
    %2130 = vsyncpa [#allocation12], 1
    %s2131 = scalar_lea.sflag [#allocation12], 1
    %2132 = vsyncpa %s2131, 1

</llo_original>
